<compile_context>
chip_gen: v7x
topology: tpu7x:2x2x1
jax: 0.10.0
libtpu: 0.0.40
codegen_flags: <defaults>
</compile_context>

<pallas_src>
import math
import numpy as np
import jax
import jax.numpy as jnp
from jax.experimental import pallas as pl
from jax.experimental.pallas import tpu as pltpu

KSIZE = 4
BN_EPS = 1e-5

# Preferred tile sizes (shrunk automatically for small problems).
_TM, _TK, _TN = 256, 512, 256
_VMEM_LIMIT = 48 * 1024 * 1024  # safe on v5e/v6e (128 MiB) and v7x (64 MiB)


def _round_up(x, m):
    return (x + m - 1) // m * m


def _pick_tile(dim, pref, align):
    return pref if dim >= pref else _round_up(dim, align)


# --------------------------------------------------------------------------
# Pallas kernels
# --------------------------------------------------------------------------
def _mm_bn_stats_kernel(x_ref, w_ref, y_ref, stats_ref, acc_ref):
    # grid = (N-tiles, classes, M-tiles, K-tiles); K innermost, N outermost so
    # the per-channel stats block (index depends only on j) stays resident
    # across the whole class/M/K sweep.
    c = pl.program_id(1)
    i = pl.program_id(2)
    k = pl.program_id(3)
    nk = pl.num_programs(3)

    @pl.when(k == 0)
    def _():
        acc_ref[...] = jnp.zeros_like(acc_ref)

    @pl.when(jnp.logical_and(jnp.logical_and(c == 0, i == 0), k == 0))
    def _():
        stats_ref[...] = jnp.zeros_like(stats_ref)

    acc_ref[...] += jnp.dot(x_ref[...], w_ref[...],
                            preferred_element_type=jnp.float32)

    @pl.when(k == nk - 1)
    def _():
        y = acc_ref[...]
        y_ref[...] = y
        s = jnp.sum(y, axis=0, keepdims=True)
        ss = jnp.sum(y * y, axis=0, keepdims=True)
        stats_ref[...] += jnp.concatenate([s, ss], axis=0)


def _mm_tanh_kernel(x_ref, w_ref, y_ref, acc_ref):
    k = pl.program_id(3)

    @pl.when(k == 0)
    def _():
        acc_ref[...] = jnp.zeros_like(acc_ref)

    acc_ref[...] += jnp.dot(x_ref[...], w_ref[...],
                            preferred_element_type=jnp.float32)

    @pl.when(k == pl.num_programs(3) - 1)
    def _():
        y_ref[...] = jnp.tanh(acc_ref[...])


def _bn_relu_kernel(y_ref, scale_ref, shift_ref, o_ref):
    # Elementwise normalize (precomputed scale/shift) + ReLU, bf16 writeback.
    o_ref[...] = jnp.maximum(
        y_ref[...] * scale_ref[...] + shift_ref[...], 0.0).astype(o_ref.dtype)


# --------------------------------------------------------------------------
# Pallas wrappers (tiling, padding, grids)
# --------------------------------------------------------------------------
def _tile_and_pad(xcols, wcols):
    C, Mc, Kc = xcols.shape
    OC = wcols.shape[-1]
    tm = _pick_tile(Mc, _TM, 8)
    tk = _pick_tile(Kc, _TK, 128)
    tn = _pick_tile(OC, _TN, 128)
    Mp, Kp, Np = _round_up(Mc, tm), _round_up(Kc, tk), _round_up(OC, tn)
    x = jnp.pad(xcols.astype(jnp.bfloat16),
                ((0, 0), (0, Mp - Mc), (0, Kp - Kc)))
    w = jnp.pad(wcols.astype(jnp.bfloat16),
                ((0, 0), (0, Kp - Kc), (0, Np - OC)))
    grid = (Np // tn, C, Mp // tm, Kp // tk)
    return x, w, (tm, tk, tn), (Mp, Kp, Np), grid


def _mm_in_specs(tm, tk, tn):
    return [
        pl.BlockSpec((None, tm, tk), lambda j, c, i, k: (c, i, k)),
        pl.BlockSpec((None, tk, tn), lambda j, c, i, k: (c, k, j)),
    ]


def _pallas_convt_bn_relu(xcols, wcols, gamma, beta):
    C, Mc, _ = xcols.shape
    OC = wcols.shape[-1]
    x, w, (tm, tk, tn), (Mp, _, Np), grid = _tile_and_pad(xcols, wcols)
    nn, _, nm, _ = grid

    # Pass 1: tiled matmul + fused per-channel sum / sum-of-squares.
    y, stats = pl.pallas_call(
        _mm_bn_stats_kernel,
        grid=grid,
        in_specs=_mm_in_specs(tm, tk, tn),
        out_specs=(
            pl.BlockSpec((None, tm, tn), lambda j, c, i, k: (c, i, j)),
            pl.BlockSpec((2, tn), lambda j, c, i, k: (0, j)),
        ),
        out_shape=(
            jax.ShapeDtypeStruct((C, Mp, Np), jnp.float32),
            jax.ShapeDtypeStruct((2, Np), jnp.float32),
        ),
        scratch_shapes=[pltpu.VMEM((tm, tn), jnp.float32)],
        compiler_params=pltpu.CompilerParams(
            dimension_semantics=("parallel", "arbitrary", "arbitrary",
                                 "arbitrary"),
            vmem_limit_bytes=_VMEM_LIMIT),
    )(x, w)

    # Fold the tiny (2, Np) statistics into per-channel scale/shift (XLA glue).
    cnt = float(C * Mc)          # padded rows/channels are all-zero rows
    mean = stats[0] / cnt
    var = jnp.maximum(stats[1] / cnt - mean * mean, 0.0)
    gpad = jnp.pad(gamma, (0, Np - OC), constant_values=1.0)
    bpad = jnp.pad(beta, (0, Np - OC))
    scale = gpad * jax.lax.rsqrt(var + BN_EPS)
    shift = bpad - mean * scale
    scale = scale.reshape(1, Np).astype(jnp.float32)
    shift = shift.reshape(1, Np).astype(jnp.float32)

    # Pass 2: tiled elementwise normalize + ReLU, bf16 activations out.
    out = pl.pallas_call(
        _bn_relu_kernel,
        grid=(C, nm, nn),
        in_specs=[
            pl.BlockSpec((None, tm, tn), lambda c, i, j: (c, i, j)),
            pl.BlockSpec((1, tn), lambda c, i, j: (0, j)),
            pl.BlockSpec((1, tn), lambda c, i, j: (0, j)),
        ],
        out_specs=pl.BlockSpec((None, tm, tn), lambda c, i, j: (c, i, j)),
        out_shape=jax.ShapeDtypeStruct((C, Mp, Np), jnp.bfloat16),
        compiler_params=pltpu.CompilerParams(
            dimension_semantics=("parallel", "parallel", "parallel"),
            vmem_limit_bytes=_VMEM_LIMIT),
    )(y, scale, shift)
    return out[:, :Mc, :OC]


def _pallas_convt_tanh(xcols, wcols):
    C, Mc, _ = xcols.shape
    OC = wcols.shape[-1]
    x, w, (tm, tk, tn), (Mp, _, Np), grid = _tile_and_pad(xcols, wcols)
    y = pl.pallas_call(
        _mm_tanh_kernel,
        grid=grid,
        in_specs=_mm_in_specs(tm, tk, tn),
        out_specs=pl.BlockSpec((None, tm, tn), lambda j, c, i, k: (c, i, j)),
        out_shape=jax.ShapeDtypeStruct((C, Mp, Np), jnp.float32),
        scratch_shapes=[pltpu.VMEM((tm, tn), jnp.float32)],
        compiler_params=pltpu.CompilerParams(
            dimension_semantics=("parallel", "parallel", "parallel",
                                 "arbitrary"),
            vmem_limit_bytes=_VMEM_LIMIT),
    )(x, w)
    return y[:, :Mc, :OC]


# --------------------------------------------------------------------------
# JAX glue: ConvTranspose2d -> im2col matrices
# --------------------------------------------------------------------------
def _convt_im2col(x_nhwc, k, stride, pad):
    # Generic path (used for the tiny stride-1 first layer): input dilation +
    # pad + flipped-kernel regular conv, expressed as im2col patches.
    B, H, W, C = x_nhwc.shape
    if stride > 1:
        Hd, Wd = (H - 1) * stride + 1, (W - 1) * stride + 1
        xd = jnp.zeros((B, Hd, Wd, C), x_nhwc.dtype)
        xd = xd.at[:, ::stride, ::stride, :].set(x_nhwc)
    else:
        xd = x_nhwc
    p = k - 1 - pad
    xp = jnp.pad(xd, ((0, 0), (p, p), (p, p), (0, 0)))
    OH = xp.shape[1] - k + 1
    OW = xp.shape[2] - k + 1
    patches = [xp[:, kh:kh + OH, kw:kw + OW, :]
               for kh in range(k) for kw in range(k)]
    col = jnp.concatenate(patches, axis=-1)      # (kh, kw, ic) column order
    return col.reshape(B * OH * OW, k * k * C), OH, OW


def _weight_to_col(w):
    # PyTorch ConvTranspose2d weight (IC, OC, KH, KW) -> flipped-kernel
    # regular-conv weight with (kh, kw, ic) row order.
    IC, OC, K, _ = w.shape
    wf = w[:, :, ::-1, ::-1]
    return jnp.transpose(wf, (2, 3, 0, 1)).reshape(K * K * IC, OC)


def _subpixel_taps(parity):
    # stride=2, pad=1, kernel=4: output row oh = 2*q + parity only receives
    # contributions from input rows ih = q + d with kernel tap kh:
    #   parity 0 -> (kh=3, d=-1), (kh=1, d=0)
    #   parity 1 -> (kh=2, d=0),  (kh=0, d=+1)
    return ((3, -1), (1, 0)) if parity == 0 else ((2, 0), (0, 1))


def _convt_s2_im2col(x_nhwc, w):
    # Sub-pixel decomposition of a stride-2 / pad-1 / k=4 ConvTranspose2d:
    # 4 parity classes, each a regular 2x2 conv (K is 4x smaller than the
    # zero-dilated formulation). Class order is c = 2*ph + pw.
    B, H, W_, IC = x_nhwc.shape
    OC = w.shape[1]
    xp = jnp.pad(x_nhwc, ((0, 0), (1, 1), (1, 1), (0, 0)))
    cols, wcols = [], []
    for ph in (0, 1):
        for pw in (0, 1):
            th, tw = _subpixel_taps(ph), _subpixel_taps(pw)
            patches = [xp[:, 1 + dh:1 + dh + H, 1 + dw:1 + dw + W_, :]
                       for (_, dh) in th for (_, dw) in tw]
            cols.append(jnp.concatenate(patches, axis=-1)
                        .reshape(B * H * W_, 4 * IC))
            taps = [w[:, :, kh, kw] for (kh, _) in th for (kw, _) in tw]
            wcols.append(jnp.stack(taps, axis=0).reshape(4 * IC, OC))
    return jnp.stack(cols, 0), jnp.stack(wcols, 0), 2 * H, 2 * W_


# --------------------------------------------------------------------------
# Generator module
# --------------------------------------------------------------------------
class PallasGenerator:
    def __init__(self, ngf, z_size, img_channels=3, image_size=64, seed=0):
        mult = int(math.log2(image_size)) - 3
        cfg = [(z_size, ngf * 2 ** mult, 1, 0, True)]
        in_c = ngf * 2 ** mult
        while mult > 0:
            mult -= 1
            cfg.append((in_c, ngf * 2 ** mult, 2, 1, True))
            in_c = ngf * 2 ** mult
        cfg.append((in_c, img_channels, 2, 1, False))

        key = jax.random.PRNGKey(seed)
        self.layers = []
        for (ic, oc, stride, pad, has_bn) in cfg:
            key, sub = jax.random.split(key)
            w = 0.05 * jax.random.normal(sub, (ic, oc, KSIZE, KSIZE),
                                         jnp.float32)
            self.layers.append(dict(w=w,
                                    gamma=jnp.ones((oc,), jnp.float32),
                                    beta=jnp.zeros((oc,), jnp.float32),
                                    stride=stride, pad=pad, has_bn=has_bn))

    def __call__(self, x_nchw):
        # bf16 activations (MXU operand dtype); matmuls accumulate in f32.
        x = jnp.transpose(x_nchw, (0, 2, 3, 1)).astype(jnp.bfloat16)
        B = x.shape[0]
        for lyr in self.layers:
            w = lyr["w"]
            OC = w.shape[1]
            if lyr["stride"] == 2 and lyr["pad"] == 1:
                cols, wcols, OH, OW = _convt_s2_im2col(x, w)
            else:
                # Tiny 1x1-latent first layer: reuse the same tiled kernels.
                col, OH, OW = _convt_im2col(x, KSIZE, lyr["stride"], lyr["pad"])
                cols, wcols = col[None], _weight_to_col(w)[None]
            if lyr["has_bn"]:
                ycls = _pallas_convt_bn_relu(cols, wcols,
                                             lyr["gamma"], lyr["beta"])
            else:
                ycls = _pallas_convt_tanh(cols, wcols)
            if ycls.shape[0] == 4:          # pixel-shuffle the parity classes
                Hh, Wh = OH // 2, OW // 2
                y = ycls.reshape(2, 2, B, Hh, Wh, OC)
                y = jnp.transpose(y, (2, 3, 0, 4, 1, 5)).reshape(B, OH, OW, OC)
            else:
                y = ycls.reshape(B, OH, OW, OC)
            x = y
        return jnp.transpose(x, (0, 3, 1, 2)).astype(jnp.float32)  # NCHW


# --------------------------------------------------------------------------
# Float64 reference (ConvTranspose2d + BatchNorm2d(train) + ReLU / Tanh)
# with bf16 rounding at the same points the TPU kernels use bf16 operands.
# --------------------------------------------------------------------------
def _bf16_round_np(a):
    a32 = np.asarray(a, np.float32)
    return np.asarray(
        jnp.asarray(a32).astype(jnp.bfloat16).astype(jnp.float32), np.float64)


def _np_conv_transpose(x, w, stride, pad):
    B, IC, H, W = x.shape
    _, OC, K, _ = w.shape
    OH = (H - 1) * stride - 2 * pad + K
    OW = (W - 1) * stride - 2 * pad + K
    y = np.zeros((B, OC, OH, OW), np.float64)
    for ih in range(H):
        for iw in range(W):
            for kh in range(K):
                for kw in range(K):
                    oh = ih * stride - pad + kh
                    ow = iw * stride - pad + kw
                    if 0 <= oh < OH and 0 <= ow < OW:
                        y[:, :, oh, ow] += x[:, :, ih, iw] @ w[:, :, kh, kw]
    return y


def _np_forward(x_nchw, layers):
    x = _bf16_round_np(np.asarray(x_nchw, np.float64))
    for lyr in layers:
        w = _bf16_round_np(np.asarray(lyr["w"], np.float64))
        y = _np_conv_transpose(x, w, lyr["stride"], lyr["pad"])
        if lyr["has_bn"]:
            mean = y.mean(axis=(0, 2, 3), keepdims=True)
            var = y.var(axis=(0, 2, 3), keepdims=True)  # biased, like BN
            g = np.asarray(lyr["gamma"], np.float64).reshape(1, -1, 1, 1)
            b = np.asarray(lyr["beta"], np.float64).reshape(1, -1, 1, 1)
            y = np.maximum((y - mean) / np.sqrt(var + BN_EPS) * g + b, 0.0)
            x = _bf16_round_np(y)       # kernels store ReLU activations bf16
        else:
            x = np.tanh(y)
    return x


if __name__ == "__main__":
    # Small config: image_size=16 -> mult=1 -> 3 ConvTranspose2d layers.
    ngf, z_size, img_channels, image_size = 8, 8, 3, 16
    batch = 2

    gen = PallasGenerator(ngf, z_size, img_channels, image_size, seed=0)

    key = jax.random.PRNGKey(0)
    x = jax.random.normal(key, (batch, z_size, 1, 1), jnp.float32)  # latent

    fwd = jax.jit(lambda inp: gen(inp))
    out = jax.block_until_ready(fwd(x))

    assert out.shape == (batch, img_channels, image_size, image_size), out.shape

    ref = _np_forward(np.asarray(x), gen.layers)
    np.testing.assert_allclose(np.asarray(out, np.float64), ref,
                               rtol=5e-3, atol=5e-3)
    print("KERNEL_OK")
</pallas_src>

<mosaic_0001>
module attributes {stable_mosaic.version = 11 : i64} {
  func.func @_mm_bn_stats_kernel(%arg0: i32, %arg1: i32, %arg2: i32, %arg3: i32, %arg4: memref<1x32x128xbf16, #tpu.memory_space<vmem>>, %arg5: memref<1x128x128xbf16, #tpu.memory_space<vmem>>, %arg6: memref<1x32x128xf32, #tpu.memory_space<vmem>>, %arg7: memref<2x128xf32, #tpu.memory_space<vmem>>, %arg8: memref<32x128xf32, #tpu.memory_space<vmem>>) attributes {dimension_semantics = [#tpu.dimension_semantics<parallel>, #tpu.dimension_semantics<arbitrary>, #tpu.dimension_semantics<arbitrary>, #tpu.dimension_semantics<arbitrary>], iteration_bounds = array<i64: 1, 1, 1, 1>, scalar_prefetch = 0 : i64, scratch_operands = 1 : i64, tpu.core_type = #tpu.core_type<tc>, window_params = [{transform_indices = @transform_0, window_bounds = array<i64: 1, 32, 128>}, {transform_indices = @transform_1, window_bounds = array<i64: 1, 128, 128>}, {transform_indices = @transform_2, window_bounds = array<i64: 1, 32, 128>}, {transform_indices = @transform_3, window_bounds = array<i64: 2, 128>}]} {
    %c0_i32 = arith.constant 0 : i32
    %0 = arith.cmpi eq, %arg3, %c0_i32 : i32
    %1 = arith.extui %0 : i1 to i32
    %c0_i32_0 = arith.constant 0 : i32
    %2 = arith.cmpi ne, %1, %c0_i32_0 : i32
    scf.if %2 {
      %cst_16 = arith.constant 0.000000e+00 : f32
      %21 = vector.broadcast %cst_16 : f32 to vector<32x128xf32>
      %c0_17 = arith.constant 0 : index
      %c0_18 = arith.constant 0 : index
      %22 = vector.load %arg8[%c0_17, %c0_18] : memref<32x128xf32, #tpu.memory_space<vmem>>, vector<32x128xf32>
      tpu.vector_store %arg8[%c0_17, %c0_18], %21 {strides = array<i32>} : memref<32x128xf32, #tpu.memory_space<vmem>>, vector<32x128xf32>,
    } else {
    }
    %c0_i32_1 = arith.constant 0 : i32
    %3 = arith.cmpi eq, %arg1, %c0_i32_1 : i32
    %c0_i32_2 = arith.constant 0 : i32
    %4 = arith.cmpi eq, %arg2, %c0_i32_2 : i32
    %5 = arith.andi %3, %4 : i1
    %c0_i32_3 = arith.constant 0 : i32
    %6 = arith.cmpi eq, %arg3, %c0_i32_3 : i32
    %7 = arith.andi %5, %6 : i1
    %8 = arith.extui %7 : i1 to i32
    %c0_i32_4 = arith.constant 0 : i32
    %9 = arith.cmpi ne, %8, %c0_i32_4 : i32
    scf.if %9 {
      %cst_16 = arith.constant 0.000000e+00 : f32
      %21 = vector.broadcast %cst_16 : f32 to vector<2x128xf32>
      %c0_17 = arith.constant 0 : index
      %c0_18 = arith.constant 0 : index
      %22 = vector.load %arg7[%c0_17, %c0_18] : memref<2x128xf32, #tpu.memory_space<vmem>>, vector<2x128xf32>
      tpu.vector_store %arg7[%c0_17, %c0_18], %21 {strides = array<i32>} : memref<2x128xf32, #tpu.memory_space<vmem>>, vector<2x128xf32>,
    } else {
    }
    %c0 = arith.constant 0 : index
    %c0_5 = arith.constant 0 : index
    %10 = vector.load %arg8[%c0, %c0_5] : memref<32x128xf32, #tpu.memory_space<vmem>>, vector<32x128xf32>
    %c0_6 = arith.constant 0 : index
    %c0_7 = arith.constant 0 : index
    %c0_8 = arith.constant 0 : index
    %11 = vector.load %arg4[%c0_6, %c0_7, %c0_8] : memref<1x32x128xbf16, #tpu.memory_space<vmem>>, vector<1x32x128xbf16>
    %12 = vector.shape_cast %11 : vector<1x32x128xbf16> to vector<32x128xbf16>
    %c0_9 = arith.constant 0 : index
    %c0_10 = arith.constant 0 : index
    %c0_11 = arith.constant 0 : index
    %13 = vector.load %arg5[%c0_9, %c0_10, %c0_11] : memref<1x128x128xbf16, #tpu.memory_space<vmem>>, vector<1x128x128xbf16>
    %14 = vector.shape_cast %13 : vector<1x128x128xbf16> to vector<128x128xbf16>
    %cst = arith.constant dense<0.000000e+00> : vector<32x128xf32>
    %15 = tpu.matmul %12, %14, %cst {dimension_numbers = #tpu.dot_dimension_numbers<[1], [0], [0], [1], [0, 0, 1, 1], [], []>} : vector<32x128xbf16>, vector<128x128xbf16>, vector<32x128xf32> -> vector<32x128xf32>
    %16 = arith.addf %10, %15 : vector<32x128xf32>
    %c0_12 = arith.constant 0 : index
    %c0_13 = arith.constant 0 : index
    %17 = vector.load %arg8[%c0_12, %c0_13] : memref<32x128xf32, #tpu.memory_space<vmem>>, vector<32x128xf32>
    tpu.vector_store %arg8[%c0_12, %c0_13], %16 {strides = array<i32>} : memref<32x128xf32, #tpu.memory_space<vmem>>, vector<32x128xf32>,
    %c0_i32_14 = arith.constant 0 : i32
    %18 = arith.cmpi eq, %arg3, %c0_i32_14 : i32
    %19 = arith.extui %18 : i1 to i32
    %c0_i32_15 = arith.constant 0 : i32
    %20 = arith.cmpi ne, %19, %c0_i32_15 : i32
    scf.if %20 {
      %c0_16 = arith.constant 0 : index
      %c0_17 = arith.constant 0 : index
      %21 = vector.load %arg8[%c0_16, %c0_17] : memref<32x128xf32, #tpu.memory_space<vmem>>, vector<32x128xf32>
      %c0_18 = arith.constant 0 : index
      %c0_19 = arith.constant 0 : index
      %c0_20 = arith.constant 0 : index
      %22 = vector.load %arg6[%c0_18, %c0_19, %c0_20] : memref<1x32x128xf32, #tpu.memory_space<vmem>>, vector<1x32x128xf32>
      %23 = vector.shape_cast %22 : vector<1x32x128xf32> to vector<32x128xf32>
      %24 = vector.shape_cast %21 : vector<32x128xf32> to vector<1x32x128xf32>
      tpu.vector_store %arg6[%c0_18, %c0_19, %c0_20], %24 {strides = array<i32>} : memref<1x32x128xf32, #tpu.memory_space<vmem>>, vector<1x32x128xf32>,
      %cst_21 = arith.constant dense<0.000000e+00> : vector<128xf32>
      %25 = vector.multi_reduction <add>, %21, %cst_21 [0] : vector<32x128xf32> to vector<128xf32>
      %26 = vector.shape_cast %25 : vector<128xf32> to vector<1x128xf32>
      %27 = arith.mulf %21, %21 : vector<32x128xf32>
      %cst_22 = arith.constant dense<0.000000e+00> : vector<128xf32>
      %28 = vector.multi_reduction <add>, %27, %cst_22 [0] : vector<32x128xf32> to vector<128xf32>
      %29 = vector.shape_cast %28 : vector<128xf32> to vector<1x128xf32>
      %c0_23 = arith.constant 0 : index
      %c0_24 = arith.constant 0 : index
      %30 = vector.load %arg7[%c0_23, %c0_24] : memref<2x128xf32, #tpu.memory_space<vmem>>, vector<2x128xf32>
      %31 = tpu.concatenate %26, %29 in 0 : vector<1x128xf32>, vector<1x128xf32> -> vector<2x128xf32>
      %32 = arith.addf %30, %31 : vector<2x128xf32>
      %c0_25 = arith.constant 0 : index
      %c0_26 = arith.constant 0 : index
      %33 = vector.load %arg7[%c0_25, %c0_26] : memref<2x128xf32, #tpu.memory_space<vmem>>, vector<2x128xf32>
      tpu.vector_store %arg7[%c0_25, %c0_26], %32 {strides = array<i32>} : memref<2x128xf32, #tpu.memory_space<vmem>>, vector<2x128xf32>,
    } else {
    }
    return
  }
  func.func @transform_0(%arg0: i32, %arg1: i32, %arg2: i32, %arg3: i32) -> (i32, i32, i32) {
    %c0_i32 = arith.constant 0 : i32
    return %arg1, %arg2, %arg3 : i32, i32, i32
  }
  func.func @transform_1(%arg0: i32, %arg1: i32, %arg2: i32, %arg3: i32) -> (i32, i32, i32) {
    %c0_i32 = arith.constant 0 : i32
    return %arg1, %arg3, %arg0 : i32, i32, i32
  }
  func.func @transform_2(%arg0: i32, %arg1: i32, %arg2: i32, %arg3: i32) -> (i32, i32, i32) {
    %c0_i32 = arith.constant 0 : i32
    return %arg1, %arg2, %arg0 : i32, i32, i32
  }
  func.func @transform_3(%arg0: i32, %arg1: i32, %arg2: i32, %arg3: i32) -> (i32, i32) {
    %c0_i32 = arith.constant 0 : i32
    %c0_i32_0 = arith.constant 0 : i32
    return %c0_i32, %arg0 : i32, i32
  }
}

module attributes {stable_mosaic.version = 11 : i64} {
  func.func @_bn_relu_kernel(%arg0: i32, %arg1: i32, %arg2: i32, %arg3: memref<1x32x128xf32, #tpu.memory_space<vmem>>, %arg4: memref<1x128xf32, #tpu.memory_space<vmem>>, %arg5: memref<1x128xf32, #tpu.memory_space<vmem>>, %arg6: memref<1x32x128xbf16, #tpu.memory_space<vmem>>) attributes {dimension_semantics = [#tpu.dimension_semantics<parallel>, #tpu.dimension_semantics<parallel>, #tpu.dimension_semantics<parallel>], iteration_bounds = array<i64: 1, 1, 1>, scalar_prefetch = 0 : i64, scratch_operands = 0 : i64, tpu.core_type = #tpu.core_type<tc>, window_params = [{transform_indices = @transform_0, window_bounds = array<i64: 1, 32, 128>}, {transform_indices = @transform_1, window_bounds = array<i64: 1, 128>}, {transform_indices = @transform_2, window_bounds = array<i64: 1, 128>}, {transform_indices = @transform_3, window_bounds = array<i64: 1, 32, 128>}]} {
    %c0 = arith.constant 0 : index
    %c0_0 = arith.constant 0 : index
    %c0_1 = arith.constant 0 : index
    %0 = vector.load %arg3[%c0, %c0_0, %c0_1] : memref<1x32x128xf32, #tpu.memory_space<vmem>>, vector<1x32x128xf32>
    %1 = vector.shape_cast %0 : vector<1x32x128xf32> to vector<32x128xf32>
    %c0_2 = arith.constant 0 : index
    %c0_3 = arith.constant 0 : index
    %2 = vector.load %arg4[%c0_2, %c0_3] : memref<1x128xf32, #tpu.memory_space<vmem>>, vector<1x128xf32>
    %3 = vector.broadcast %2 : vector<1x128xf32> to vector<32x128xf32>
    %4 = arith.mulf %1, %3 : vector<32x128xf32>
    %c0_4 = arith.constant 0 : index
    %c0_5 = arith.constant 0 : index
    %5 = vector.load %arg5[%c0_4, %c0_5] : memref<1x128xf32, #tpu.memory_space<vmem>>, vector<1x128xf32>
    %6 = vector.broadcast %5 : vector<1x128xf32> to vector<32x128xf32>
    %7 = arith.addf %4, %6 : vector<32x128xf32>
    %cst = arith.constant 0.000000e+00 : f32
    %8 = vector.broadcast %cst : f32 to vector<32x128xf32>
    %9 = arith.maximumf %7, %8 : vector<32x128xf32>
    %10 = arith.truncf %9 : vector<32x128xf32> to vector<32x128xbf16>
    %c0_6 = arith.constant 0 : index
    %c0_7 = arith.constant 0 : index
    %c0_8 = arith.constant 0 : index
    %11 = vector.load %arg6[%c0_6, %c0_7, %c0_8] : memref<1x32x128xbf16, #tpu.memory_space<vmem>>, vector<1x32x128xbf16>
    %12 = vector.shape_cast %11 : vector<1x32x128xbf16> to vector<32x128xbf16>
    %13 = vector.shape_cast %10 : vector<32x128xbf16> to vector<1x32x128xbf16>
    tpu.vector_store %arg6[%c0_6, %c0_7, %c0_8], %13 {strides = array<i32>} : memref<1x32x128xbf16, #tpu.memory_space<vmem>>, vector<1x32x128xbf16>,
    return
  }
  func.func @transform_0(%arg0: i32, %arg1: i32, %arg2: i32) -> (i32, i32, i32) {
    %c0_i32 = arith.constant 0 : i32
    return %arg0, %arg1, %arg2 : i32, i32, i32
  }
  func.func @transform_1(%arg0: i32, %arg1: i32, %arg2: i32) -> (i32, i32) {
    %c0_i32 = arith.constant 0 : i32
    %c0_i32_0 = arith.constant 0 : i32
    return %c0_i32, %arg2 : i32, i32
  }
  func.func @transform_2(%arg0: i32, %arg1: i32, %arg2: i32) -> (i32, i32) {
    %c0_i32 = arith.constant 0 : i32
    %c0_i32_0 = arith.constant 0 : i32
    return %c0_i32, %arg2 : i32, i32
  }
  func.func @transform_3(%arg0: i32, %arg1: i32, %arg2: i32) -> (i32, i32, i32) {
    %c0_i32 = arith.constant 0 : i32
    return %arg0, %arg1, %arg2 : i32, i32, i32
  }
}

module attributes {stable_mosaic.version = 11 : i64} {
  func.func @_mm_bn_stats_kernel(%arg0: i32, %arg1: i32, %arg2: i32, %arg3: i32, %arg4: memref<1x32x128xbf16, #tpu.memory_space<vmem>>, %arg5: memref<1x128x128xbf16, #tpu.memory_space<vmem>>, %arg6: memref<1x32x128xf32, #tpu.memory_space<vmem>>, %arg7: memref<2x128xf32, #tpu.memory_space<vmem>>, %arg8: memref<32x128xf32, #tpu.memory_space<vmem>>) attributes {dimension_semantics = [#tpu.dimension_semantics<parallel>, #tpu.dimension_semantics<arbitrary>, #tpu.dimension_semantics<arbitrary>, #tpu.dimension_semantics<arbitrary>], iteration_bounds = array<i64: 1, 4, 1, 1>, scalar_prefetch = 0 : i64, scratch_operands = 1 : i64, tpu.core_type = #tpu.core_type<tc>, window_params = [{transform_indices = @transform_0, window_bounds = array<i64: 1, 32, 128>}, {transform_indices = @transform_1, window_bounds = array<i64: 1, 128, 128>}, {transform_indices = @transform_2, window_bounds = array<i64: 1, 32, 128>}, {transform_indices = @transform_3, window_bounds = array<i64: 2, 128>}]} {
    %c0_i32 = arith.constant 0 : i32
    %0 = arith.cmpi eq, %arg3, %c0_i32 : i32
    %1 = arith.extui %0 : i1 to i32
    %c0_i32_0 = arith.constant 0 : i32
    %2 = arith.cmpi ne, %1, %c0_i32_0 : i32
    scf.if %2 {
      %cst_16 = arith.constant 0.000000e+00 : f32
      %21 = vector.broadcast %cst_16 : f32 to vector<32x128xf32>
      %c0_17 = arith.constant 0 : index
      %c0_18 = arith.constant 0 : index
      %22 = vector.load %arg8[%c0_17, %c0_18] : memref<32x128xf32, #tpu.memory_space<vmem>>, vector<32x128xf32>
      tpu.vector_store %arg8[%c0_17, %c0_18], %21 {strides = array<i32>} : memref<32x128xf32, #tpu.memory_space<vmem>>, vector<32x128xf32>,
    } else {
    }
    %c0_i32_1 = arith.constant 0 : i32
    %3 = arith.cmpi eq, %arg1, %c0_i32_1 : i32
    %c0_i32_2 = arith.constant 0 : i32
    %4 = arith.cmpi eq, %arg2, %c0_i32_2 : i32
    %5 = arith.andi %3, %4 : i1
    %c0_i32_3 = arith.constant 0 : i32
    %6 = arith.cmpi eq, %arg3, %c0_i32_3 : i32
    %7 = arith.andi %5, %6 : i1
    %8 = arith.extui %7 : i1 to i32
    %c0_i32_4 = arith.constant 0 : i32
    %9 = arith.cmpi ne, %8, %c0_i32_4 : i32
    scf.if %9 {
      %cst_16 = arith.constant 0.000000e+00 : f32
      %21 = vector.broadcast %cst_16 : f32 to vector<2x128xf32>
      %c0_17 = arith.constant 0 : index
      %c0_18 = arith.constant 0 : index
      %22 = vector.load %arg7[%c0_17, %c0_18] : memref<2x128xf32, #tpu.memory_space<vmem>>, vector<2x128xf32>
      tpu.vector_store %arg7[%c0_17, %c0_18], %21 {strides = array<i32>} : memref<2x128xf32, #tpu.memory_space<vmem>>, vector<2x128xf32>,
    } else {
    }
    %c0 = arith.constant 0 : index
    %c0_5 = arith.constant 0 : index
    %10 = vector.load %arg8[%c0, %c0_5] : memref<32x128xf32, #tpu.memory_space<vmem>>, vector<32x128xf32>
    %c0_6 = arith.constant 0 : index
    %c0_7 = arith.constant 0 : index
    %c0_8 = arith.constant 0 : index
    %11 = vector.load %arg4[%c0_6, %c0_7, %c0_8] : memref<1x32x128xbf16, #tpu.memory_space<vmem>>, vector<1x32x128xbf16>
    %12 = vector.shape_cast %11 : vector<1x32x128xbf16> to vector<32x128xbf16>
    %c0_9 = arith.constant 0 : index
    %c0_10 = arith.constant 0 : index
    %c0_11 = arith.constant 0 : index
    %13 = vector.load %arg5[%c0_9, %c0_10, %c0_11] : memref<1x128x128xbf16, #tpu.memory_space<vmem>>, vector<1x128x128xbf16>
    %14 = vector.shape_cast %13 : vector<1x128x128xbf16> to vector<128x128xbf16>
    %cst = arith.constant dense<0.000000e+00> : vector<32x128xf32>
    %15 = tpu.matmul %12, %14, %cst {dimension_numbers = #tpu.dot_dimension_numbers<[1], [0], [0], [1], [0, 0, 1, 1], [], []>} : vector<32x128xbf16>, vector<128x128xbf16>, vector<32x128xf32> -> vector<32x128xf32>
    %16 = arith.addf %10, %15 : vector<32x128xf32>
    %c0_12 = arith.constant 0 : index
    %c0_13 = arith.constant 0 : index
    %17 = vector.load %arg8[%c0_12, %c0_13] : memref<32x128xf32, #tpu.memory_space<vmem>>, vector<32x128xf32>
    tpu.vector_store %arg8[%c0_12, %c0_13], %16 {strides = array<i32>} : memref<32x128xf32, #tpu.memory_space<vmem>>, vector<32x128xf32>,
    %c0_i32_14 = arith.constant 0 : i32
    %18 = arith.cmpi eq, %arg3, %c0_i32_14 : i32
    %19 = arith.extui %18 : i1 to i32
    %c0_i32_15 = arith.constant 0 : i32
    %20 = arith.cmpi ne, %19, %c0_i32_15 : i32
    scf.if %20 {
      %c0_16 = arith.constant 0 : index
      %c0_17 = arith.constant 0 : index
      %21 = vector.load %arg8[%c0_16, %c0_17] : memref<32x128xf32, #tpu.memory_space<vmem>>, vector<32x128xf32>
      %c0_18 = arith.constant 0 : index
      %c0_19 = arith.constant 0 : index
      %c0_20 = arith.constant 0 : index
      %22 = vector.load %arg6[%c0_18, %c0_19, %c0_20] : memref<1x32x128xf32, #tpu.memory_space<vmem>>, vector<1x32x128xf32>
      %23 = vector.shape_cast %22 : vector<1x32x128xf32> to vector<32x128xf32>
      %24 = vector.shape_cast %21 : vector<32x128xf32> to vector<1x32x128xf32>
      tpu.vector_store %arg6[%c0_18, %c0_19, %c0_20], %24 {strides = array<i32>} : memref<1x32x128xf32, #tpu.memory_space<vmem>>, vector<1x32x128xf32>,
      %cst_21 = arith.constant dense<0.000000e+00> : vector<128xf32>
      %25 = vector.multi_reduction <add>, %21, %cst_21 [0] : vector<32x128xf32> to vector<128xf32>
      %26 = vector.shape_cast %25 : vector<128xf32> to vector<1x128xf32>
      %27 = arith.mulf %21, %21 : vector<32x128xf32>
      %cst_22 = arith.constant dense<0.000000e+00> : vector<128xf32>
      %28 = vector.multi_reduction <add>, %27, %cst_22 [0] : vector<32x128xf32> to vector<128xf32>
      %29 = vector.shape_cast %28 : vector<128xf32> to vector<1x128xf32>
      %c0_23 = arith.constant 0 : index
      %c0_24 = arith.constant 0 : index
      %30 = vector.load %arg7[%c0_23, %c0_24] : memref<2x128xf32, #tpu.memory_space<vmem>>, vector<2x128xf32>
      %31 = tpu.concatenate %26, %29 in 0 : vector<1x128xf32>, vector<1x128xf32> -> vector<2x128xf32>
      %32 = arith.addf %30, %31 : vector<2x128xf32>
      %c0_25 = arith.constant 0 : index
      %c0_26 = arith.constant 0 : index
      %33 = vector.load %arg7[%c0_25, %c0_26] : memref<2x128xf32, #tpu.memory_space<vmem>>, vector<2x128xf32>
      tpu.vector_store %arg7[%c0_25, %c0_26], %32 {strides = array<i32>} : memref<2x128xf32, #tpu.memory_space<vmem>>, vector<2x128xf32>,
    } else {
    }
    return
  }
  func.func @transform_0(%arg0: i32, %arg1: i32, %arg2: i32, %arg3: i32) -> (i32, i32, i32) {
    %c0_i32 = arith.constant 0 : i32
    return %arg1, %arg2, %arg3 : i32, i32, i32
  }
  func.func @transform_1(%arg0: i32, %arg1: i32, %arg2: i32, %arg3: i32) -> (i32, i32, i32) {
    %c0_i32 = arith.constant 0 : i32
    return %arg1, %arg3, %arg0 : i32, i32, i32
  }
  func.func @transform_2(%arg0: i32, %arg1: i32, %arg2: i32, %arg3: i32) -> (i32, i32, i32) {
    %c0_i32 = arith.constant 0 : i32
    return %arg1, %arg2, %arg0 : i32, i32, i32
  }
  func.func @transform_3(%arg0: i32, %arg1: i32, %arg2: i32, %arg3: i32) -> (i32, i32) {
    %c0_i32 = arith.constant 0 : i32
    %c0_i32_0 = arith.constant 0 : i32
    return %c0_i32, %arg0 : i32, i32
  }
}

module attributes {stable_mosaic.version = 11 : i64} {
  func.func @_bn_relu_kernel(%arg0: i32, %arg1: i32, %arg2: i32, %arg3: memref<1x32x128xf32, #tpu.memory_space<vmem>>, %arg4: memref<1x128xf32, #tpu.memory_space<vmem>>, %arg5: memref<1x128xf32, #tpu.memory_space<vmem>>, %arg6: memref<1x32x128xbf16, #tpu.memory_space<vmem>>) attributes {dimension_semantics = [#tpu.dimension_semantics<parallel>, #tpu.dimension_semantics<parallel>, #tpu.dimension_semantics<parallel>], iteration_bounds = array<i64: 4, 1, 1>, scalar_prefetch = 0 : i64, scratch_operands = 0 : i64, tpu.core_type = #tpu.core_type<tc>, window_params = [{transform_indices = @transform_0, window_bounds = array<i64: 1, 32, 128>}, {transform_indices = @transform_1, window_bounds = array<i64: 1, 128>}, {transform_indices = @transform_2, window_bounds = array<i64: 1, 128>}, {transform_indices = @transform_3, window_bounds = array<i64: 1, 32, 128>}]} {
    %c0 = arith.constant 0 : index
    %c0_0 = arith.constant 0 : index
    %c0_1 = arith.constant 0 : index
    %0 = vector.load %arg3[%c0, %c0_0, %c0_1] : memref<1x32x128xf32, #tpu.memory_space<vmem>>, vector<1x32x128xf32>
    %1 = vector.shape_cast %0 : vector<1x32x128xf32> to vector<32x128xf32>
    %c0_2 = arith.constant 0 : index
    %c0_3 = arith.constant 0 : index
    %2 = vector.load %arg4[%c0_2, %c0_3] : memref<1x128xf32, #tpu.memory_space<vmem>>, vector<1x128xf32>
    %3 = vector.broadcast %2 : vector<1x128xf32> to vector<32x128xf32>
    %4 = arith.mulf %1, %3 : vector<32x128xf32>
    %c0_4 = arith.constant 0 : index
    %c0_5 = arith.constant 0 : index
    %5 = vector.load %arg5[%c0_4, %c0_5] : memref<1x128xf32, #tpu.memory_space<vmem>>, vector<1x128xf32>
    %6 = vector.broadcast %5 : vector<1x128xf32> to vector<32x128xf32>
    %7 = arith.addf %4, %6 : vector<32x128xf32>
    %cst = arith.constant 0.000000e+00 : f32
    %8 = vector.broadcast %cst : f32 to vector<32x128xf32>
    %9 = arith.maximumf %7, %8 : vector<32x128xf32>
    %10 = arith.truncf %9 : vector<32x128xf32> to vector<32x128xbf16>
    %c0_6 = arith.constant 0 : index
    %c0_7 = arith.constant 0 : index
    %c0_8 = arith.constant 0 : index
    %11 = vector.load %arg6[%c0_6, %c0_7, %c0_8] : memref<1x32x128xbf16, #tpu.memory_space<vmem>>, vector<1x32x128xbf16>
    %12 = vector.shape_cast %11 : vector<1x32x128xbf16> to vector<32x128xbf16>
    %13 = vector.shape_cast %10 : vector<32x128xbf16> to vector<1x32x128xbf16>
    tpu.vector_store %arg6[%c0_6, %c0_7, %c0_8], %13 {strides = array<i32>} : memref<1x32x128xbf16, #tpu.memory_space<vmem>>, vector<1x32x128xbf16>,
    return
  }
  func.func @transform_0(%arg0: i32, %arg1: i32, %arg2: i32) -> (i32, i32, i32) {
    %c0_i32 = arith.constant 0 : i32
    return %arg0, %arg1, %arg2 : i32, i32, i32
  }
  func.func @transform_1(%arg0: i32, %arg1: i32, %arg2: i32) -> (i32, i32) {
    %c0_i32 = arith.constant 0 : i32
    %c0_i32_0 = arith.constant 0 : i32
    return %c0_i32, %arg2 : i32, i32
  }
  func.func @transform_2(%arg0: i32, %arg1: i32, %arg2: i32) -> (i32, i32) {
    %c0_i32 = arith.constant 0 : i32
    %c0_i32_0 = arith.constant 0 : i32
    return %c0_i32, %arg2 : i32, i32
  }
  func.func @transform_3(%arg0: i32, %arg1: i32, %arg2: i32) -> (i32, i32, i32) {
    %c0_i32 = arith.constant 0 : i32
    return %arg0, %arg1, %arg2 : i32, i32, i32
  }
}

module attributes {stable_mosaic.version = 11 : i64} {
  func.func @_mm_tanh_kernel(%arg0: i32, %arg1: i32, %arg2: i32, %arg3: i32, %arg4: memref<1x128x128xbf16, #tpu.memory_space<vmem>>, %arg5: memref<1x128x128xbf16, #tpu.memory_space<vmem>>, %arg6: memref<1x128x128xf32, #tpu.memory_space<vmem>>, %arg7: memref<128x128xf32, #tpu.memory_space<vmem>>) attributes {dimension_semantics = [#tpu.dimension_semantics<parallel>, #tpu.dimension_semantics<parallel>, #tpu.dimension_semantics<parallel>, #tpu.dimension_semantics<arbitrary>], iteration_bounds = array<i64: 1, 4, 1, 1>, scalar_prefetch = 0 : i64, scratch_operands = 1 : i64, tpu.core_type = #tpu.core_type<tc>, window_params = [{transform_indices = @transform_0, window_bounds = array<i64: 1, 128, 128>}, {transform_indices = @transform_1, window_bounds = array<i64: 1, 128, 128>}, {transform_indices = @transform_2, window_bounds = array<i64: 1, 128, 128>}]} {
    %c0_i32 = arith.constant 0 : i32
    %0 = arith.cmpi eq, %arg3, %c0_i32 : i32
    %1 = arith.extui %0 : i1 to i32
    %c0_i32_0 = arith.constant 0 : i32
    %2 = arith.cmpi ne, %1, %c0_i32_0 : i32
    scf.if %2 {
      %cst_12 = arith.constant 0.000000e+00 : f32
      %14 = vector.broadcast %cst_12 : f32 to vector<128x128xf32>
      %c0_13 = arith.constant 0 : index
      %c0_14 = arith.constant 0 : index
      %15 = vector.load %arg7[%c0_13, %c0_14] : memref<128x128xf32, #tpu.memory_space<vmem>>, vector<128x128xf32>
      tpu.vector_store %arg7[%c0_13, %c0_14], %14 {strides = array<i32>} : memref<128x128xf32, #tpu.memory_space<vmem>>, vector<128x128xf32>,
    } else {
    }
    %c0 = arith.constant 0 : index
    %c0_1 = arith.constant 0 : index
    %3 = vector.load %arg7[%c0, %c0_1] : memref<128x128xf32, #tpu.memory_space<vmem>>, vector<128x128xf32>
    %c0_2 = arith.constant 0 : index
    %c0_3 = arith.constant 0 : index
    %c0_4 = arith.constant 0 : index
    %4 = vector.load %arg4[%c0_2, %c0_3, %c0_4] : memref<1x128x128xbf16, #tpu.memory_space<vmem>>, vector<1x128x128xbf16>
    %5 = vector.shape_cast %4 : vector<1x128x128xbf16> to vector<128x128xbf16>
    %c0_5 = arith.constant 0 : index
    %c0_6 = arith.constant 0 : index
    %c0_7 = arith.constant 0 : index
    %6 = vector.load %arg5[%c0_5, %c0_6, %c0_7] : memref<1x128x128xbf16, #tpu.memory_space<vmem>>, vector<1x128x128xbf16>
    %7 = vector.shape_cast %6 : vector<1x128x128xbf16> to vector<128x128xbf16>
    %cst = arith.constant dense<0.000000e+00> : vector<128x128xf32>
    %8 = tpu.matmul %5, %7, %cst {dimension_numbers = #tpu.dot_dimension_numbers<[1], [0], [0], [1], [0, 0, 1, 1], [], []>} : vector<128x128xbf16>, vector<128x128xbf16>, vector<128x128xf32> -> vector<128x128xf32>
    %9 = arith.addf %3, %8 : vector<128x128xf32>
    %c0_8 = arith.constant 0 : index
    %c0_9 = arith.constant 0 : index
    %10 = vector.load %arg7[%c0_8, %c0_9] : memref<128x128xf32, #tpu.memory_space<vmem>>, vector<128x128xf32>
    tpu.vector_store %arg7[%c0_8, %c0_9], %9 {strides = array<i32>} : memref<128x128xf32, #tpu.memory_space<vmem>>, vector<128x128xf32>,
    %c0_i32_10 = arith.constant 0 : i32
    %11 = arith.cmpi eq, %arg3, %c0_i32_10 : i32
    %12 = arith.extui %11 : i1 to i32
    %c0_i32_11 = arith.constant 0 : i32
    %13 = arith.cmpi ne, %12, %c0_i32_11 : i32
    scf.if %13 {
      %c0_12 = arith.constant 0 : index
      %c0_13 = arith.constant 0 : index
      %14 = vector.load %arg7[%c0_12, %c0_13] : memref<128x128xf32, #tpu.memory_space<vmem>>, vector<128x128xf32>
      %15 = math.tanh %14 : vector<128x128xf32>
      %c0_14 = arith.constant 0 : index
      %c0_15 = arith.constant 0 : index
      %c0_16 = arith.constant 0 : index
      %16 = vector.load %arg6[%c0_14, %c0_15, %c0_16] : memref<1x128x128xf32, #tpu.memory_space<vmem>>, vector<1x128x128xf32>
      %17 = vector.shape_cast %16 : vector<1x128x128xf32> to vector<128x128xf32>
      %18 = vector.shape_cast %15 : vector<128x128xf32> to vector<1x128x128xf32>
      tpu.vector_store %arg6[%c0_14, %c0_15, %c0_16], %18 {strides = array<i32>} : memref<1x128x128xf32, #tpu.memory_space<vmem>>, vector<1x128x128xf32>,
    } else {
    }
    return
  }
  func.func @transform_0(%arg0: i32, %arg1: i32, %arg2: i32, %arg3: i32) -> (i32, i32, i32) {
    %c0_i32 = arith.constant 0 : i32
    return %arg1, %arg2, %arg3 : i32, i32, i32
  }
  func.func @transform_1(%arg0: i32, %arg1: i32, %arg2: i32, %arg3: i32) -> (i32, i32, i32) {
    %c0_i32 = arith.constant 0 : i32
    return %arg1, %arg3, %arg0 : i32, i32, i32
  }
  func.func @transform_2(%arg0: i32, %arg1: i32, %arg2: i32, %arg3: i32) -> (i32, i32, i32) {
    %c0_i32 = arith.constant 0 : i32
    return %arg1, %arg2, %arg0 : i32, i32, i32
  }
}

</mosaic_0001>

<llo_original>
// kernel: _lambda_.6
$region0: #{_lambda_.6}
  #allocation0 [shape = 'u32[]', space=smem, size = 0x4, offset = 0x4, fixed_abs, tag = 'smem constant byte address 0x4 - core index']
  #allocation1 [shape = 'u32[144,128]{1,0:T(1,128)}', space=vmem, size = 0x12000, scoped, tag = 'internal scratch']
  %s0 = inlined_call_operand.vmem [shape: f32[1,32,128], index: 0, kind: input, shape index: {}]
  %s1 = inlined_call_operand.vmem [shape: f32[1,128], index: 1, kind: input, shape index: {}]
  %s2 = inlined_call_operand.vmem [shape: f32[1,128], index: 2, kind: input, shape index: {}]
  %s3 = inlined_call_operand.vmem [shape: bf16[1,32,128], index: 3, kind: output, shape index: {}]
  %s4 = sld [smem:[#allocation0]]
  $region22: #{_lambda_.6} parent=0
    _
  %s6 = ssub.s32 1, %s4
  %s7 = scalar_select 0, %s6, %s4
  // Predicated region
  $region2: #{_lambda_.6} parent=0 // pred_check
    _
  $region3: #{_lambda_.6} parent=0 // pred_check_branch
    %9 = sbr.rel (0) target = $region5
  $region4: #{_lambda_.6} parent=0 // pred_region
    _
  $region5: #{_lambda_.6} parent=0 // pred_fallthru
    _
  // Predicated region
  $region6: #{_lambda_.6} parent=0 // pred_check
    _
  $region7: #{_lambda_.6} parent=0 // pred_check_branch
    %11 = sbr.rel (0) target = $region9
  $region8: #{_lambda_.6} parent=0 // pred_region
    _
  $region9: #{_lambda_.6} parent=0 // pred_fallthru
    _
  // Predicated region
  $region10: #{_lambda_.6} parent=0 // pred_check
    _
  $region11: #{_lambda_.6} parent=0 // pred_check_branch
    %13 = sbr.rel (0) target = $region13
  $region12: #{_lambda_.6} parent=0 // pred_region
    _
  $region13: #{_lambda_.6} parent=0 // pred_fallthru
    _
  %v14 = vld [vmem:[%s0] sm:$0xff]
  %v15 = vld [vmem:[%s0 + $0x8] sm:$0xff]
  %v16 = vld [vmem:[%s0 + $0x10] sm:$0xff]
  %v17 = vld [vmem:[%s0 + $0x18] sm:$0xff]
  %v18 = vld [vmem:[%s1] sm:$0x1]
  %v20 = vlaneseq
  %v21 = vshrl.u32 %v20, 7
  %v22 = vsub.s32 0, %v21
  %v23 = vrot.slane %v18, %v22
  %v25 = vmul.f32 %v14, %v23
  %v26 = vmul.f32 %v15, %v23
  %v27 = vmul.f32 %v16, %v23
  %v28 = vmul.f32 %v17, %v23
  %v29 = vld [vmem:[%s2] sm:$0x1]
  %v31 = vlaneseq
  %v32 = vshrl.u32 %v31, 7
  %v33 = vsub.s32 0, %v32
  %v34 = vrot.slane %v29, %v33
  %v36 = vadd.f32 %v25, %v34
  %v37 = vadd.f32 %v26, %v34
  %v38 = vadd.f32 %v27, %v34
  %v39 = vadd.f32 %v28, %v34
  %v40 = vmax.f32 %v36, 0.0
  %v41 = vmax.f32 %v37, 0.0
  %v42 = vmax.f32 %v38, 0.0
  %v43 = vmax.f32 %v39, 0.0
  %v44 = vpack.c.bf16 %v41, %v40
  %v45 = vpack.c.bf16 %v43, %v42
  %v48 = vunpack.c.l.b16 %v44
  %v49 = vunpack.c.h.b16 %v44
  %v50 = vunpack.c.l.b16 %v45
  %v51 = vunpack.c.h.b16 %v45
  %v52 = vpack.c.b16 %v48, %v48
  %v53 = vpack.c.b16 %v49, %v49
  %v54 = vpack.c.b16 %v50, %v50
  %v55 = vpack.c.b16 %v51, %v51
  %60 = vst [vmem:[%s3] sm:$0xf] %v52
  %61 = vst [vmem:[%s3 + $0x4] sm:$0xf] %v53
  %62 = vst [vmem:[%s3 + $0x8] sm:$0xf] %v54
  %63 = vst [vmem:[%s3 + $0xc] sm:$0xf] %v55
  // Predicated region
  $region14: #{_lambda_.6} parent=0 // pred_check
    _
  $region15: #{_lambda_.6} parent=0 // pred_check_branch
    %65 = sbr.rel (0) target = $region17
  $region16: #{_lambda_.6} parent=0 // pred_region
    _
  $region17: #{_lambda_.6} parent=0 // pred_fallthru
    _
  // Predicated region
  $region18: #{_lambda_.6} parent=0 // pred_check
    _
  $region19: #{_lambda_.6} parent=0 // pred_check_branch
    %67 = sbr.rel (0) target = $region21
  $region20: #{_lambda_.6} parent=0 // pred_region
    _
  $region21: #{_lambda_.6} parent=0 // pred_fallthru
    _

// kernel: _lambda_.5
$region0: #{_lambda_.5}
  #allocation0 [shape = 'u32[]', space=smem, size = 0x4, offset = 0x4, fixed_abs, tag = 'smem constant byte address 0x4 - core index']
  #allocation1 [shape = 'u32[144,128]{1,0:T(1,128)}', space=vmem, size = 0x12000, scoped, tag = 'internal scratch']
  #allocation2 [shape = 'f32[32,128]{1,0:T(8,128)}', space=vmem, size = 0x4000, scoped, tag = 'scratch operand']
  %s0 = inlined_call_operand.vmem [shape: bf16[1,32,128], index: 0, kind: input, shape index: {}]
  %s1 = inlined_call_operand.vmem [shape: bf16[1,128,128], index: 1, kind: input, shape index: {}]
  %s2 = inlined_call_operand.vmem [shape: f32[1,32,128], index: 2, kind: output, shape index: {0}]
  %s3 = inlined_call_operand.vmem [shape: f32[2,128], index: 3, kind: output, shape index: {1}]
  %4 = xla_tuple %s2, %s3
  %s5 = sld [smem:[#allocation0]]
  $region38: #{_lambda_.5} parent=0
    _
  %s7 = ssub.s32 1, %s5
  %s8 = scalar_select 0, %s7, %s5
  // Predicated region
  $region2: #{_lambda_.5} parent=0 // pred_check
    _
  $region3: #{_lambda_.5} parent=0 // pred_check_branch
    %10 = sbr.rel (0) target = $region5
  $region4: #{_lambda_.5} parent=0 // pred_region
    _
  $region5: #{_lambda_.5} parent=0 // pred_fallthru
    _
  // Predicated region
  $region6: #{_lambda_.5} parent=0 // pred_check
    _
  $region7: #{_lambda_.5} parent=0 // pred_check_branch
    %12 = sbr.rel (0) target = $region9
  $region8: #{_lambda_.5} parent=0 // pred_region
    _
  $region9: #{_lambda_.5} parent=0 // pred_fallthru
    _
  %p14 = scmp.eq.s32.totalorder 0, 0
  // Predicated region
  $region10: #{_lambda_.5} parent=0 // pred_check
    %p15 = pneg %p14
  $region11: #{_lambda_.5} parent=0 // pred_check_branch
    %17 = sbr.rel (%p15) target = $region13
  $region12: #{_lambda_.5} parent=0 // pred_region
    %18 = vst [vmem:[#allocation2] sm:$0xff] 0.0
    %19 = vst [vmem:[#allocation2 + $0x8] sm:$0xff] 0.0
    %20 = vst [vmem:[#allocation2 + $0x10] sm:$0xff] 0.0
    %21 = vst [vmem:[#allocation2 + $0x18] sm:$0xff] 0.0
  $region13: #{_lambda_.5} parent=0 // pred_fallthru
    _
  %p22 = scmp.eq.s32.totalorder 0, 0
  %p23 = scmp.eq.s32.totalorder 0, 0
  %p24 = pnand %p22, %p23
  %p25 = pneg %p24
  %p26 = pnand %p25, %p14
  %p27 = pneg %p26
  // Predicated region
  $region14: #{_lambda_.5} parent=0 // pred_check
    _
  $region15: #{_lambda_.5} parent=0 // pred_check_branch
    %29 = sbr.rel (%p26) target = $region17
  $region16: #{_lambda_.5} parent=0 // pred_region
    %30 = vst [vmem:[%s3] sm:$0x3] 0.0
  $region17: #{_lambda_.5} parent=0 // pred_fallthru
    _
  %v31 = vld [vmem:[#allocation2] sm:$0xff]
  %v32 = vld [vmem:[#allocation2 + $0x8] sm:$0xff]
  %v33 = vld [vmem:[#allocation2 + $0x10] sm:$0xff]
  %v34 = vld [vmem:[#allocation2 + $0x18] sm:$0xff]
  %v35 = vld [vmem:[%s0] sm:$0xf]
  %v36 = vld [vmem:[%s0 + $0x4] sm:$0xf]
  %v37 = vld [vmem:[%s0 + $0x8] sm:$0xf]
  %v38 = vld [vmem:[%s0 + $0xc] sm:$0xf]
  %v39 = vld [vmem:[%s1] sm:$0xf]
  %v40 = vld [vmem:[%s1 + $0x4] sm:$0xf]
  %v41 = vld [vmem:[%s1 + $0x8] sm:$0xf]
  %v42 = vld [vmem:[%s1 + $0xc] sm:$0xf]
  %v43 = vld [vmem:[%s1 + $0x10] sm:$0xf]
  %v44 = vld [vmem:[%s1 + $0x14] sm:$0xf]
  %v45 = vld [vmem:[%s1 + $0x18] sm:$0xf]
  %v46 = vld [vmem:[%s1 + $0x1c] sm:$0xf]
  %v47 = vld [vmem:[%s1 + $0x20] sm:$0xf]
  %v48 = vld [vmem:[%s1 + $0x24] sm:$0xf]
  %v49 = vld [vmem:[%s1 + $0x28] sm:$0xf]
  %v50 = vld [vmem:[%s1 + $0x2c] sm:$0xf]
  %v51 = vld [vmem:[%s1 + $0x30] sm:$0xf]
  %v52 = vld [vmem:[%s1 + $0x34] sm:$0xf]
  %v53 = vld [vmem:[%s1 + $0x38] sm:$0xf]
  %v54 = vld [vmem:[%s1 + $0x3c] sm:$0xf]
  %v59 = vunpack.c.l.b16 %v35
  %v60 = vunpack.c.l.b16 %v36
  %v61 = vunpack.c.l.b16 %v37
  %v62 = vunpack.c.l.b16 %v38
  %v63 = vpack.c.b16 %v60, %v59
  %v64 = vpack.c.b16 %v62, %v61
  %v83 = vunpack.c.l.b16 %v39
  %v84 = vunpack.c.l.b16 %v40
  %v85 = vunpack.c.l.b16 %v41
  %v86 = vunpack.c.l.b16 %v42
  %v87 = vunpack.c.l.b16 %v43
  %v88 = vunpack.c.l.b16 %v44
  %v89 = vunpack.c.l.b16 %v45
  %v90 = vunpack.c.l.b16 %v46
  %v91 = vunpack.c.l.b16 %v47
  %v92 = vunpack.c.l.b16 %v48
  %v93 = vunpack.c.l.b16 %v49
  %v94 = vunpack.c.l.b16 %v50
  %v95 = vunpack.c.l.b16 %v51
  %v96 = vunpack.c.l.b16 %v52
  %v97 = vunpack.c.l.b16 %v53
  %v98 = vunpack.c.l.b16 %v54
  %v99 = vpack.c.b16 %v84, %v83
  %v100 = vpack.c.b16 %v86, %v85
  %v101 = vpack.c.b16 %v88, %v87
  %v102 = vpack.c.b16 %v90, %v89
  %v103 = vpack.c.b16 %v92, %v91
  %v104 = vpack.c.b16 %v94, %v93
  %v105 = vpack.c.b16 %v96, %v95
  %v106 = vpack.c.b16 %v98, %v97
  %115 = vmatprep.subr.bf16.mxu0 0
  %116 = vmatpush1.bf16.msra.mxu0 %v99
  %117 = vmatprep.subr.bf16.mxu0 0
  %118 = vmatpush1.bf16.msra.mxu0 %v100
  %119 = vmatprep.subr.bf16.mxu0 0
  %120 = vmatpush1.bf16.msra.mxu0 %v101
  %121 = vmatprep.subr.bf16.mxu0 0
  %122 = vmatpush1.bf16.msra.mxu0 %v102
  %123 = vmatprep.subr.bf16.mxu0 0
  %124 = vmatpush1.bf16.msra.mxu0 %v103
  %125 = vmatprep.subr.bf16.mxu0 0
  %126 = vmatpush1.bf16.msra.mxu0 %v104
  %127 = vmatprep.subr.bf16.mxu0 0
  %128 = vmatpush1.bf16.msra.mxu0 %v105
  %129 = vmatprep.subr.bf16.mxu0 0
  %130 = vmatpush1.bf16.msra.mxu0 %v106
  %131 = vmatprep.subr.bf16.mxu0 0
  %132 = vmatpush1.bf16.msra.mxu0 0
  %133 = vmatprep.subr.bf16.mxu0 0
  %134 = vmatpush1.bf16.msra.mxu0 0
  %135 = vmatprep.subr.bf16.mxu0 0
  %136 = vmatpush1.bf16.msra.mxu0 0
  %137 = vmatprep.subr.bf16.mxu0 0
  %138 = vmatpush1.bf16.msra.mxu0 0
  %139 = vmatprep.subr.bf16.mxu0 0
  %140 = vmatpush1.bf16.msra.mxu0 0
  %141 = vmatprep.subr.bf16.mxu0 0
  %142 = vmatpush1.bf16.msra.mxu0 0
  %143 = vmatprep.subr.bf16.mxu0 0
  %144 = vmatpush1.bf16.msra.mxu0 0
  %145 = vmatprep.subr.bf16.mxu0 0
  %146 = vmatpush1.bf16.msra.mxu0 0
  %147 = vmatprep.mubr.bf16.mxu0 0
  %148 = vmatmul.mubr.bf16.gmra.mrb[0].mxu0 %v63
  %v149 = vpop.f32.mrb[0].mxu0
  %v150 = vadd.f32 0.0, %v149
  %v151 = vpop.f32.mrb[0].mxu0
  %v152 = vpop.f32.mrb[0].mxu0
  %v153 = vadd.f32 0.0, %v152
  %v154 = vpop.f32.mrb[0].mxu0
  %155 = vmatprep.mubr.bf16.mxu0 0
  %156 = vmatmul.mubr.bf16.gmra.mrb[0].mxu0 %v64
  %v157 = vpop.f32.mrb[0].mxu0
  %v158 = vadd.f32 0.0, %v157
  %v159 = vpop.f32.mrb[0].mxu0
  %v160 = vpop.f32.mrb[0].mxu0
  %v161 = vadd.f32 0.0, %v160
  %v162 = vpop.f32.mrb[0].mxu0
  %163 = vdwg.mxu0
  %v164 = vadd.f32 %v31, %v150
  %v165 = vadd.f32 %v32, %v153
  %v166 = vadd.f32 %v33, %v158
  %v167 = vadd.f32 %v34, %v161
  %168 = vst [vmem:[#allocation2] sm:$0xff] %v164
  %169 = vst [vmem:[#allocation2 + $0x8] sm:$0xff] %v165
  %170 = vst [vmem:[#allocation2 + $0x10] sm:$0xff] %v166
  %171 = vst [vmem:[#allocation2 + $0x18] sm:$0xff] %v167
  // Predicated region
  $region18: #{_lambda_.5} parent=0 // pred_check
    %p172 = pneg %p14
  $region19: #{_lambda_.5} parent=0 // pred_check_branch
    %174 = sbr.rel (%p172) target = $region21
  $region20: #{_lambda_.5} parent=0 // pred_region
    %v175 = vld [vmem:[#allocation2] sm:$0xff]
    %v176 = vld [vmem:[#allocation2 + $0x8] sm:$0xff]
    %v177 = vld [vmem:[#allocation2 + $0x10] sm:$0xff]
    %v178 = vld [vmem:[#allocation2 + $0x18] sm:$0xff]
    %179 = vst [vmem:[%s2] sm:$0xff] %v175
    %180 = vst [vmem:[%s2 + $0x8] sm:$0xff] %v176
    %181 = vst [vmem:[%s2 + $0x10] sm:$0xff] %v177
    %182 = vst [vmem:[%s2 + $0x18] sm:$0xff] %v178
    %v183 = vadd.f32 %v175, %v176
    %v184 = vadd.f32 %v183, %v177
    %v185 = vadd.f32 %v184, %v178
    %v186 = vrot.slane %v185, 4
    %v187 = vadd.f32 %v185, %v186
    %v188 = vrot.slane %v187, 2
    %v189 = vadd.f32 %v187, %v188
    %v190 = vrot.slane %v189, 1
    %v191 = vadd.f32 %v189, %v190
    %v192 = vmul.f32 %v175, %v175
    %v193 = vmul.f32 %v176, %v176
    %v194 = vmul.f32 %v177, %v177
    %v195 = vmul.f32 %v178, %v178
    %v196 = vadd.f32 %v192, %v193
    %v197 = vadd.f32 %v196, %v194
    %v198 = vadd.f32 %v197, %v195
    %v199 = vrot.slane %v198, 4
    %v200 = vadd.f32 %v198, %v199
    %v201 = vrot.slane %v200, 2
    %v202 = vadd.f32 %v200, %v201
    %v203 = vrot.slane %v202, 1
    %v204 = vadd.f32 %v202, %v203
    %v205 = vld [vmem:[%s3] sm:$0x3]
    %vm206 = vcmask 1040384
    %v207 = vsel %vm206, %v191, %v204
    %v208 = vadd.f32 %v205, %v207
    %209 = vst [vmem:[%s3] sm:$0x3] %v208
  $region21: #{_lambda_.5} parent=0 // pred_fallthru
    _
  // Predicated region
  $region22: #{_lambda_.5} parent=0 // pred_check
    _
  $region23: #{_lambda_.5} parent=0 // pred_check_branch
    %211 = sbr.rel (0) target = $region25
  $region24: #{_lambda_.5} parent=0 // pred_region
    _
  $region25: #{_lambda_.5} parent=0 // pred_fallthru
    _
  // Predicated region
  $region26: #{_lambda_.5} parent=0 // pred_check
    _
  $region27: #{_lambda_.5} parent=0 // pred_check_branch
    %213 = sbr.rel (0) target = $region29
  $region28: #{_lambda_.5} parent=0 // pred_region
    _
  $region29: #{_lambda_.5} parent=0 // pred_fallthru
    _
  // Predicated region
  $region30: #{_lambda_.5} parent=0 // pred_check
    _
  $region31: #{_lambda_.5} parent=0 // pred_check_branch
    %215 = sbr.rel (0) target = $region33
  $region32: #{_lambda_.5} parent=0 // pred_region
    _
  $region33: #{_lambda_.5} parent=0 // pred_fallthru
    _
  // Predicated region
  $region34: #{_lambda_.5} parent=0 // pred_check
    _
  $region35: #{_lambda_.5} parent=0 // pred_check_branch
    %217 = sbr.rel (0) target = $region37
  $region36: #{_lambda_.5} parent=0 // pred_region
    _
  $region37: #{_lambda_.5} parent=0 // pred_fallthru
    _

// kernel: _lambda_.7
$region0: #{_lambda_.7}
  #allocation0 [shape = 'u32[]', space=smem, size = 0x4, offset = 0x4, fixed_abs, tag = 'smem constant byte address 0x4 - core index']
  #allocation1 [shape = 'u32[144,128]{1,0:T(1,128)}', space=vmem, size = 0x12000, scoped, tag = 'internal scratch']
  #allocation2 [shape = 'f32[32,128]{1,0:T(8,128)}', space=vmem, size = 0x4000, scoped, tag = 'scratch operand']
  %s0 = inlined_call_operand.vmem [shape: bf16[4,32,128], index: 0, kind: input, shape index: {}]
  %s1 = inlined_call_operand.vmem [shape: bf16[4,128,128], index: 1, kind: input, shape index: {}]
  %s2 = inlined_call_operand.vmem [shape: f32[4,32,128], index: 2, kind: output, shape index: {0}]
  %s3 = inlined_call_operand.vmem [shape: f32[2,128], index: 3, kind: output, shape index: {1}]
  %4 = xla_tuple %s2, %s3
  %s5 = sld [smem:[#allocation0]]
  $region61: #{_lambda_.7} parent=0
    _
  %s7 = ssub.s32 1, %s5
  %s8 = scalar_select 0, %s7, %s5
  loop: start=0, step=1, limit=6
  $region2: #{_lambda_.7} parent=0 // loop_pre_header
    _
  $region3: #{_lambda_.7} parent=0 // loop_header
    %s10 = sphi 0, %s14
    %p11 = scmp.ge.s32.totalorder %s10, 6
    %s17 = sphi 0, %s43
    %s18 = sphi 0, %s39
    %s19 = sphi 0, %s35
    %s20 = sphi 0, %s31
    %s21 = sphi 0, %s17
    %s22 = sphi 0, %s18
    %s23 = sphi 0, %s19
    %s24 = sphi 0, %s20
    %s25 = sphi 0, %s21
    %s26 = sphi 0, %s22
    %s27 = sphi 0, %s23
    %s28 = sphi 0, %s24
    %s50 = sphi 0, %s52
    %s53 = sphi 0, %s50
    %s54 = sphi 0, %s53
    %s70 = sphi 0, %s54
    %s80 = sphi 0, %s82
    %s83 = sphi 0, %s80
    %s84 = sphi 0, %s83
    %s100 = sphi 0, %s84
    %s110 = sphi 0, %s112
    %s113 = sphi 0, %s110
    %s114 = sphi 0, %s113
    %s130 = sphi 0, %s114
    %s136 = sphi 0, %s138
    %s139 = sphi 0, %s136
    %s140 = sphi 0, %s139
    %s156 = sphi 0, %s140
  $region4: #{_lambda_.7} parent=0 // loop_header_branch
    %13 = sbr.rel (%p11) target = $region8
  $region5: #{_lambda_.7} parent=0 // loop_body
    %s15 = ssub.s32 %s10, 1
    %s16 = ssub.s32 %s10, 2
    %s29 = sadd.s32 1, %s20
    %p30 = scmp.ge.s32.totalorder %s29, 1
    %s31 = scalar_select %p30, 0, %s29
    %s32 = sadd.s32 1, %s19
    %s33 = scalar_select %p30, %s32, %s19
    %p34 = scmp.ge.s32.totalorder %s33, 1
    %s35 = scalar_select %p34, 0, %s33
    %s36 = sadd.s32 1, %s18
    %s37 = scalar_select %p34, %s36, %s18
    %p38 = scmp.ge.s32.totalorder %s37, 4
    %s39 = scalar_select %p38, 0, %s37
    %s40 = sadd.s32 1, %s17
    %s41 = scalar_select %p38, %s40, %s17
    %p42 = scmp.ge.s32.totalorder %s41, 1
    %s43 = scalar_select %p42, 0, %s41
    %s44 = ssub.s32 %s18, %s39
    %s45 = ssub.s32 %s19, %s35
    %s46 = sor.u32 %s44, %s45
    %s47 = ssub.s32 %s20, %s31
    %s48 = sor.u32 %s46, %s47
    %p49 = scmp.eq.s32.totalorder %s48, 0
    %s51 = sadd.s32 %s50, 1
    %s52 = scalar_select %p49, %s50, %s51
    %p55 = pneg %p49
    %p56 = scmp.eq.s32.totalorder %s10, 3
    %p57 = por %p55, %p56
    %p58 = scmp.ne.s32.totalorder %s50, %s53
    %p59 = scmp.eq.s32.totalorder %s10, 0
    %p60 = por %p58, %p59
    %p61 = scmp.ne.s32.totalorder %s50, %s53
    %p62 = scmp.eq.s32.totalorder %s15, 3
    %p63 = por %p61, %p62
    %p64 = scmp.ne.s32.totalorder %s53, %s54
    %p65 = scmp.eq.s32.totalorder %s15, 0
    %p66 = por %p64, %p65
    %p67 = scmp.ne.s32.totalorder %s53, %s54
    %p68 = scmp.eq.s32.totalorder %s16, 3
    %p69 = por %p67, %p68
    %p71 = scmp.ne.s32.totalorder %s54, %s70
    %p72 = scmp.eq.s32.totalorder %s16, 0
    %p73 = por %p71, %p72
    %s74 = ssub.s32 %s18, %s39
    %s75 = ssub.s32 %s20, %s31
    %s76 = sor.u32 %s74, %s75
    %s77 = ssub.s32 %s17, %s43
    %s78 = sor.u32 %s76, %s77
    %p79 = scmp.eq.s32.totalorder %s78, 0
    %s81 = sadd.s32 %s80, 1
    %s82 = scalar_select %p79, %s80, %s81
    %p85 = pneg %p79
    %p86 = scmp.eq.s32.totalorder %s10, 3
    %p87 = por %p85, %p86
    %p88 = scmp.ne.s32.totalorder %s80, %s83
    %p89 = scmp.eq.s32.totalorder %s10, 0
    %p90 = por %p88, %p89
    %p91 = scmp.ne.s32.totalorder %s80, %s83
    %p92 = scmp.eq.s32.totalorder %s15, 3
    %p93 = por %p91, %p92
    %p94 = scmp.ne.s32.totalorder %s83, %s84
    %p95 = scmp.eq.s32.totalorder %s15, 0
    %p96 = por %p94, %p95
    %p97 = scmp.ne.s32.totalorder %s83, %s84
    %p98 = scmp.eq.s32.totalorder %s16, 3
    %p99 = por %p97, %p98
    %p101 = scmp.ne.s32.totalorder %s84, %s100
    %p102 = scmp.eq.s32.totalorder %s16, 0
    %p103 = por %p101, %p102
    %s104 = ssub.s32 %s18, %s39
    %s105 = ssub.s32 %s19, %s35
    %s106 = sor.u32 %s104, %s105
    %s107 = ssub.s32 %s17, %s43
    %s108 = sor.u32 %s106, %s107
    %p109 = scmp.eq.s32.totalorder %s108, 0
    %s111 = sadd.s32 %s110, 1
    %s112 = scalar_select %p109, %s110, %s111
    %p115 = pneg %p109
    %p116 = scmp.eq.s32.totalorder %s10, 3
    %p117 = por %p115, %p116
    %p118 = scmp.ne.s32.totalorder %s110, %s113
    %p119 = scmp.eq.s32.totalorder %s10, 0
    %p120 = por %p118, %p119
    %p121 = scmp.ne.s32.totalorder %s110, %s113
    %p122 = scmp.eq.s32.totalorder %s15, 3
    %p123 = por %p121, %p122
    %p124 = scmp.ne.s32.totalorder %s113, %s114
    %p125 = scmp.eq.s32.totalorder %s15, 0
    %p126 = por %p124, %p125
    %p127 = scmp.ne.s32.totalorder %s113, %s114
    %p128 = scmp.eq.s32.totalorder %s16, 3
    %p129 = por %p127, %p128
    %p131 = scmp.ne.s32.totalorder %s114, %s130
    %p132 = scmp.eq.s32.totalorder %s16, 0
    %p133 = por %p131, %p132
    %s134 = ssub.s32 %s17, %s43
    %p135 = scmp.eq.s32.totalorder %s134, 0
    %s137 = sadd.s32 %s136, 1
    %s138 = scalar_select %p135, %s136, %s137
    %p141 = pneg %p135
    %p142 = scmp.eq.s32.totalorder %s10, 3
    %p143 = por %p141, %p142
    %p144 = scmp.ne.s32.totalorder %s136, %s139
    %p145 = scmp.eq.s32.totalorder %s10, 0
    %p146 = por %p144, %p145
    %p147 = scmp.ne.s32.totalorder %s136, %s139
    %p148 = scmp.eq.s32.totalorder %s15, 3
    %p149 = por %p147, %p148
    %p150 = scmp.ne.s32.totalorder %s139, %s140
    %p151 = scmp.eq.s32.totalorder %s15, 0
    %p152 = por %p150, %p151
    %p153 = scmp.ne.s32.totalorder %s139, %s140
    %p154 = scmp.eq.s32.totalorder %s16, 3
    %p155 = por %p153, %p154
    %p157 = scmp.ne.s32.totalorder %s140, %s156
    %p158 = scmp.eq.s32.totalorder %s16, 0
    %p159 = por %p157, %p158
    %p160 = scmp.le.s32.totalorder 1, %s10
    %p161 = scmp.lt.s32.totalorder %s10, 5
    %p162 = pnand %p160, %p161
    %p163 = pneg %p162
    // Predicated region
    $region9: #{_lambda_.7} parent=5 // pred_check
      _
    $region10: #{_lambda_.7} parent=5 // pred_check_branch
      %165 = sbr.rel (%p162) target = $region12
    $region11: #{_lambda_.7} parent=5 // pred_region
      %s166 = ssub.s32 %s10, 1
    $region12: #{_lambda_.7} parent=5 // pred_fallthru
      _
    %p167 = scmp.lt.s32.totalorder %s10, 4
    // Predicated region
    $region13: #{_lambda_.7} parent=5 // pred_check
      %p168 = pneg %p167
    $region14: #{_lambda_.7} parent=5 // pred_check_branch
      %170 = sbr.rel (%p168) target = $region16
    $region15: #{_lambda_.7} parent=5 // pred_region
      // Predicated region
      $region17: #{_lambda_.7} parent=15 // pred_check
        %p171 = pneg %p60
      $region18: #{_lambda_.7} parent=15 // pred_check_branch
        %173 = sbr.rel (%p171) target = $region20
      $region19: #{_lambda_.7} parent=15 // pred_region
        %s174 = smul.u32 4, %s19
        %p175 = scmp.lt.s32.totalorder %s18, 3
        %s176 = scalar_select %p175, %s18, 3
        %p177 = scmp.lt.s32.totalorder %s174, 3
        %s178 = scalar_select %p177, %s174, 3
        %p179 = scmp.lt.s32.totalorder %s20, 0
        %s180 = scalar_select %p179, %s20, 0
        %s181 = sadd.s32 %s180, %s178
        %s182 = smul.addr %s176, 4
        %s183 = sadd.s32 %s181, %s182
        %s184 = smul.addr %s183, 4
        %s185 = scalar_lea.vmem %s0, %s184
        %s186 = smul.u32 4, %s19
      $region20: #{_lambda_.7} parent=15 // pred_fallthru
        _
      // Predicated region
      $region21: #{_lambda_.7} parent=15 // pred_check
        %p187 = pneg %p90
      $region22: #{_lambda_.7} parent=15 // pred_check_branch
        %189 = sbr.rel (%p187) target = $region24
      $region23: #{_lambda_.7} parent=15 // pred_region
        %s190 = smul.u32 16, %s20
        %p191 = scmp.lt.s32.totalorder %s18, 3
        %s192 = scalar_select %p191, %s18, 3
        %p193 = scmp.lt.s32.totalorder %s190, 15
        %s194 = scalar_select %p193, %s190, 15
        %p195 = scmp.lt.s32.totalorder %s17, 0
        %s196 = scalar_select %p195, %s17, 0
        %s197 = sadd.s32 %s196, %s194
        %s198 = smul.addr %s192, 16
        %s199 = sadd.s32 %s197, %s198
        %s200 = smul.addr %s199, 4
        %s201 = scalar_lea.vmem %s1, %s200
        %s202 = smul.u32 16, %s20
      $region24: #{_lambda_.7} parent=15 // pred_fallthru
        _
    $region16: #{_lambda_.7} parent=5 // pred_fallthru
      _
    %p203 = scmp.le.s32.totalorder 1, %s10
    %p204 = scmp.lt.s32.totalorder %s10, 5
    %p205 = pnand %p203, %p204
    %p206 = pneg %p205
    // Predicated region
    $region25: #{_lambda_.7} parent=5 // pred_check
      _
    $region26: #{_lambda_.7} parent=5 // pred_check_branch
      %208 = sbr.rel (%p205) target = $region28
    $region27: #{_lambda_.7} parent=5 // pred_region
      %s209 = ssub.s32 %s10, 1
      %s210 = smul.u32 4, %s23
      %p211 = scmp.lt.s32.totalorder %s22, 3
      %s212 = scalar_select %p211, %s22, 3
      %p213 = scmp.lt.s32.totalorder %s210, 3
      %s214 = scalar_select %p213, %s210, 3
      %p215 = scmp.lt.s32.totalorder %s24, 0
      %s216 = scalar_select %p215, %s24, 0
      %s217 = sadd.s32 %s216, %s214
      %s218 = smul.addr %s212, 4
      %s219 = sadd.s32 %s217, %s218
      %s220 = smul.addr %s219, 4
      %s221 = scalar_lea.vmem %s0, %s220
      %p222 = pneg %p66
      %p223 = pneg %p63
      %s224 = smul.u32 16, %s24
      %p225 = scmp.lt.s32.totalorder %s22, 3
      %s226 = scalar_select %p225, %s22, 3
      %p227 = scmp.lt.s32.totalorder %s224, 15
      %s228 = scalar_select %p227, %s224, 15
      %p229 = scmp.lt.s32.totalorder %s21, 0
      %s230 = scalar_select %p229, %s21, 0
      %s231 = sadd.s32 %s230, %s228
      %s232 = smul.addr %s226, 16
      %s233 = sadd.s32 %s231, %s232
      %s234 = smul.addr %s233, 4
      %s235 = scalar_lea.vmem %s1, %s234
      %p236 = pneg %p96
      %p237 = pneg %p93
      %p238 = pneg %p126
      %p239 = pneg %p123
      %s240 = smul.u32 4, %s23
      %p241 = scmp.lt.s32.totalorder %s22, 3
      %s242 = scalar_select %p241, %s22, 3
      %p243 = scmp.lt.s32.totalorder %s240, 3
      %s244 = scalar_select %p243, %s240, 3
      %p245 = scmp.lt.s32.totalorder %s21, 0
      %s246 = scalar_select %p245, %s21, 0
      %s247 = sadd.s32 %s246, %s244
      %s248 = smul.addr %s242, 4
      %s249 = sadd.s32 %s247, %s248
      %s250 = smul.addr %s249, 8
      %s251 = scalar_lea.vmem %s2, %s250
      %p252 = pneg %p152
      %p253 = pneg %p149
      %p254 = scmp.lt.s32.totalorder %s21, 0
      %s255 = scalar_select %p254, %s21, 0
      %s256 = smul.addr %s255, 2
      %s257 = scalar_lea.vmem %s3, %s256
      %s258 = smul.u32 4, %s23
      %p259 = scmp.lt.s32.totalorder %s22, 3
      %s260 = scalar_select %p259, %s22, 3
      %p261 = scmp.lt.s32.totalorder %s258, 3
      %s262 = scalar_select %p261, %s258, 3
      %p263 = scmp.lt.s32.totalorder %s24, 0
      %s264 = scalar_select %p263, %s24, 0
      %s265 = sadd.s32 %s264, %s262
      %s266 = smul.addr %s260, 4
      %s267 = sadd.s32 %s265, %s266
      %s268 = smul.addr %s267, 4
      %s269 = scalar_lea.vmem %s0, %s268
      %s270 = smul.u32 4, %s23
      %s271 = smul.u32 16, %s24
      %p272 = scmp.lt.s32.totalorder %s22, 3
      %s273 = scalar_select %p272, %s22, 3
      %p274 = scmp.lt.s32.totalorder %s271, 15
      %s275 = scalar_select %p274, %s271, 15
      %p276 = scmp.lt.s32.totalorder %s21, 0
      %s277 = scalar_select %p276, %s21, 0
      %s278 = sadd.s32 %s277, %s275
      %s279 = smul.addr %s273, 16
      %s280 = sadd.s32 %s278, %s279
      %s281 = smul.addr %s280, 4
      %s282 = scalar_lea.vmem %s1, %s281
      %s283 = smul.u32 16, %s24
      %s284 = smul.u32 4, %s23
      %p285 = scmp.lt.s32.totalorder %s22, 3
      %s286 = scalar_select %p285, %s22, 3
      %p287 = scmp.lt.s32.totalorder %s284, 3
      %s288 = scalar_select %p287, %s284, 3
      %p289 = scmp.lt.s32.totalorder %s21, 0
      %s290 = scalar_select %p289, %s21, 0
      %s291 = sadd.s32 %s290, %s288
      %s292 = smul.addr %s286, 4
      %s293 = sadd.s32 %s291, %s292
      %s294 = smul.addr %s293, 8
      %s295 = scalar_lea.vmem %s2, %s294
      %s296 = smul.u32 4, %s23
      %p297 = scmp.lt.s32.totalorder %s21, 0
      %s298 = scalar_select %p297, %s21, 0
      %s299 = smul.addr %s298, 2
      %s300 = scalar_lea.vmem %s3, %s299
      %p302 = scmp.eq.s32.totalorder %s24, 0
      // Predicated region
      $region29: #{_lambda_.7} parent=27 // pred_check
        %p303 = pneg %p302
      $region30: #{_lambda_.7} parent=27 // pred_check_branch
        %305 = sbr.rel (%p303) target = $region32
      $region31: #{_lambda_.7} parent=27 // pred_region
        %306 = vst [vmem:[#allocation2] sm:$0xff] 0.0
        %307 = vst [vmem:[#allocation2 + $0x8] sm:$0xff] 0.0
        %308 = vst [vmem:[#allocation2 + $0x10] sm:$0xff] 0.0
        %309 = vst [vmem:[#allocation2 + $0x18] sm:$0xff] 0.0
      $region32: #{_lambda_.7} parent=27 // pred_fallthru
        _
      %p310 = scmp.eq.s32.totalorder %s22, 0
      %p311 = scmp.eq.s32.totalorder %s23, 0
      %p312 = pnand %p310, %p311
      %p313 = pneg %p312
      %p314 = pnand %p313, %p302
      %p315 = pneg %p314
      // Predicated region
      $region33: #{_lambda_.7} parent=27 // pred_check
        _
      $region34: #{_lambda_.7} parent=27 // pred_check_branch
        %317 = sbr.rel (%p314) target = $region36
      $region35: #{_lambda_.7} parent=27 // pred_region
        %318 = vst [vmem:[%s300] sm:$0x3] 0.0
      $region36: #{_lambda_.7} parent=27 // pred_fallthru
        _
      %v319 = vld [vmem:[#allocation2] sm:$0xff]
      %v320 = vld [vmem:[#allocation2 + $0x8] sm:$0xff]
      %v321 = vld [vmem:[#allocation2 + $0x10] sm:$0xff]
      %v322 = vld [vmem:[#allocation2 + $0x18] sm:$0xff]
      %v323 = vld [vmem:[%s269] sm:$0xf]
      %v324 = vld [vmem:[%s269 + $0x4] sm:$0xf]
      %v325 = vld [vmem:[%s269 + $0x8] sm:$0xf]
      %v326 = vld [vmem:[%s269 + $0xc] sm:$0xf]
      %v327 = vld [vmem:[%s282] sm:$0xf]
      %v328 = vld [vmem:[%s282 + $0x4] sm:$0xf]
      %v329 = vld [vmem:[%s282 + $0x8] sm:$0xf]
      %v330 = vld [vmem:[%s282 + $0xc] sm:$0xf]
      %v331 = vld [vmem:[%s282 + $0x10] sm:$0xf]
      %v332 = vld [vmem:[%s282 + $0x14] sm:$0xf]
      %v333 = vld [vmem:[%s282 + $0x18] sm:$0xf]
      %v334 = vld [vmem:[%s282 + $0x1c] sm:$0xf]
      %v335 = vld [vmem:[%s282 + $0x20] sm:$0xf]
      %v336 = vld [vmem:[%s282 + $0x24] sm:$0xf]
      %v337 = vld [vmem:[%s282 + $0x28] sm:$0xf]
      %v338 = vld [vmem:[%s282 + $0x2c] sm:$0xf]
      %v339 = vld [vmem:[%s282 + $0x30] sm:$0xf]
      %v340 = vld [vmem:[%s282 + $0x34] sm:$0xf]
      %v341 = vld [vmem:[%s282 + $0x38] sm:$0xf]
      %v342 = vld [vmem:[%s282 + $0x3c] sm:$0xf]
      %v347 = vunpack.c.l.b16 %v323
      %v348 = vunpack.c.l.b16 %v324
      %v349 = vunpack.c.l.b16 %v325
      %v350 = vunpack.c.l.b16 %v326
      %v351 = vpack.c.b16 %v348, %v347
      %v352 = vpack.c.b16 %v350, %v349
      %v371 = vunpack.c.l.b16 %v327
      %v372 = vunpack.c.l.b16 %v328
      %v373 = vunpack.c.l.b16 %v329
      %v374 = vunpack.c.l.b16 %v330
      %v375 = vunpack.c.l.b16 %v331
      %v376 = vunpack.c.l.b16 %v332
      %v377 = vunpack.c.l.b16 %v333
      %v378 = vunpack.c.l.b16 %v334
      %v379 = vunpack.c.l.b16 %v335
      %v380 = vunpack.c.l.b16 %v336
      %v381 = vunpack.c.l.b16 %v337
      %v382 = vunpack.c.l.b16 %v338
      %v383 = vunpack.c.l.b16 %v339
      %v384 = vunpack.c.l.b16 %v340
      %v385 = vunpack.c.l.b16 %v341
      %v386 = vunpack.c.l.b16 %v342
      %v387 = vpack.c.b16 %v372, %v371
      %v388 = vpack.c.b16 %v374, %v373
      %v389 = vpack.c.b16 %v376, %v375
      %v390 = vpack.c.b16 %v378, %v377
      %v391 = vpack.c.b16 %v380, %v379
      %v392 = vpack.c.b16 %v382, %v381
      %v393 = vpack.c.b16 %v384, %v383
      %v394 = vpack.c.b16 %v386, %v385
      %403 = vmatprep.subr.bf16.mxu0 0
      %404 = vmatpush1.bf16.msra.mxu0 %v387
      %405 = vmatprep.subr.bf16.mxu0 0
      %406 = vmatpush1.bf16.msra.mxu0 %v388
      %407 = vmatprep.subr.bf16.mxu0 0
      %408 = vmatpush1.bf16.msra.mxu0 %v389
      %409 = vmatprep.subr.bf16.mxu0 0
      %410 = vmatpush1.bf16.msra.mxu0 %v390
      %411 = vmatprep.subr.bf16.mxu0 0
      %412 = vmatpush1.bf16.msra.mxu0 %v391
      %413 = vmatprep.subr.bf16.mxu0 0
      %414 = vmatpush1.bf16.msra.mxu0 %v392
      %415 = vmatprep.subr.bf16.mxu0 0
      %416 = vmatpush1.bf16.msra.mxu0 %v393
      %417 = vmatprep.subr.bf16.mxu0 0
      %418 = vmatpush1.bf16.msra.mxu0 %v394
      %419 = vmatprep.subr.bf16.mxu0 0
      %420 = vmatpush1.bf16.msra.mxu0 0
      %421 = vmatprep.subr.bf16.mxu0 0
      %422 = vmatpush1.bf16.msra.mxu0 0
      %423 = vmatprep.subr.bf16.mxu0 0
      %424 = vmatpush1.bf16.msra.mxu0 0
      %425 = vmatprep.subr.bf16.mxu0 0
      %426 = vmatpush1.bf16.msra.mxu0 0
      %427 = vmatprep.subr.bf16.mxu0 0
      %428 = vmatpush1.bf16.msra.mxu0 0
      %429 = vmatprep.subr.bf16.mxu0 0
      %430 = vmatpush1.bf16.msra.mxu0 0
      %431 = vmatprep.subr.bf16.mxu0 0
      %432 = vmatpush1.bf16.msra.mxu0 0
      %433 = vmatprep.subr.bf16.mxu0 0
      %434 = vmatpush1.bf16.msra.mxu0 0
      %435 = vmatprep.mubr.bf16.mxu0 0
      %436 = vmatmul.mubr.bf16.gmra.mrb[0].mxu0 %v351
      %v437 = vpop.f32.mrb[0].mxu0
      %v438 = vadd.f32 0.0, %v437
      %v439 = vpop.f32.mrb[0].mxu0
      %v440 = vpop.f32.mrb[0].mxu0
      %v441 = vadd.f32 0.0, %v440
      %v442 = vpop.f32.mrb[0].mxu0
      %443 = vmatprep.mubr.bf16.mxu0 0
      %444 = vmatmul.mubr.bf16.gmra.mrb[0].mxu0 %v352
      %v445 = vpop.f32.mrb[0].mxu0
      %v446 = vadd.f32 0.0, %v445
      %v447 = vpop.f32.mrb[0].mxu0
      %v448 = vpop.f32.mrb[0].mxu0
      %v449 = vadd.f32 0.0, %v448
      %v450 = vpop.f32.mrb[0].mxu0
      %451 = vdwg.mxu0
      %v452 = vadd.f32 %v319, %v438
      %v453 = vadd.f32 %v320, %v441
      %v454 = vadd.f32 %v321, %v446
      %v455 = vadd.f32 %v322, %v449
      %456 = vst [vmem:[#allocation2] sm:$0xff] %v452
      %457 = vst [vmem:[#allocation2 + $0x8] sm:$0xff] %v453
      %458 = vst [vmem:[#allocation2 + $0x10] sm:$0xff] %v454
      %459 = vst [vmem:[#allocation2 + $0x18] sm:$0xff] %v455
      // Predicated region
      $region37: #{_lambda_.7} parent=27 // pred_check
        %p460 = pneg %p302
      $region38: #{_lambda_.7} parent=27 // pred_check_branch
        %462 = sbr.rel (%p460) target = $region40
      $region39: #{_lambda_.7} parent=27 // pred_region
        %v463 = vld [vmem:[#allocation2] sm:$0xff]
        %v464 = vld [vmem:[#allocation2 + $0x8] sm:$0xff]
        %v465 = vld [vmem:[#allocation2 + $0x10] sm:$0xff]
        %v466 = vld [vmem:[#allocation2 + $0x18] sm:$0xff]
        %467 = vst [vmem:[%s295] sm:$0xff] %v463
        %468 = vst [vmem:[%s295 + $0x8] sm:$0xff] %v464
        %469 = vst [vmem:[%s295 + $0x10] sm:$0xff] %v465
        %470 = vst [vmem:[%s295 + $0x18] sm:$0xff] %v466
        %v471 = vadd.f32 %v463, %v464
        %v472 = vadd.f32 %v471, %v465
        %v473 = vadd.f32 %v472, %v466
        %v474 = vrot.slane %v473, 4
        %v475 = vadd.f32 %v473, %v474
        %v476 = vrot.slane %v475, 2
        %v477 = vadd.f32 %v475, %v476
        %v478 = vrot.slane %v477, 1
        %v479 = vadd.f32 %v477, %v478
        %v480 = vmul.f32 %v463, %v463
        %v481 = vmul.f32 %v464, %v464
        %v482 = vmul.f32 %v465, %v465
        %v483 = vmul.f32 %v466, %v466
        %v484 = vadd.f32 %v480, %v481
        %v485 = vadd.f32 %v484, %v482
        %v486 = vadd.f32 %v485, %v483
        %v487 = vrot.slane %v486, 4
        %v488 = vadd.f32 %v486, %v487
        %v489 = vrot.slane %v488, 2
        %v490 = vadd.f32 %v488, %v489
        %v491 = vrot.slane %v490, 1
        %v492 = vadd.f32 %v490, %v491
        %v493 = vld [vmem:[%s300] sm:$0x3]
        %vm494 = vcmask 1040384
        %v495 = vsel %vm494, %v479, %v492
        %v496 = vadd.f32 %v493, %v495
        %497 = vst [vmem:[%s300] sm:$0x3] %v496
      $region40: #{_lambda_.7} parent=27 // pred_fallthru
        _
      %s498 = smul.u32 4, %s23
      %p499 = scmp.lt.s32.totalorder %s22, 3
      %s500 = scalar_select %p499, %s22, 3
      %p501 = scmp.lt.s32.totalorder %s498, 3
      %s502 = scalar_select %p501, %s498, 3
      %p503 = scmp.lt.s32.totalorder %s21, 0
      %s504 = scalar_select %p503, %s21, 0
      %s505 = sadd.s32 %s504, %s502
      %s506 = smul.addr %s500, 4
      %s507 = sadd.s32 %s505, %s506
      %s508 = smul.addr %s507, 8
      %s509 = scalar_lea.vmem %s2, %s508
      %p510 = scmp.lt.s32.totalorder %s21, 0
      %s511 = scalar_select %p510, %s21, 0
      %s512 = smul.addr %s511, 2
      %s513 = scalar_lea.vmem %s3, %s512
      // Predicated region
      $region41: #{_lambda_.7} parent=27 // pred_check
        %p514 = pneg %p123
      $region42: #{_lambda_.7} parent=27 // pred_check_branch
        %516 = sbr.rel (%p514) target = $region44
      $region43: #{_lambda_.7} parent=27 // pred_region
        %s517 = smul.u32 4, %s23
      $region44: #{_lambda_.7} parent=27 // pred_fallthru
        _
      // Predicated region
      $region45: #{_lambda_.7} parent=27 // pred_check
        %p518 = pneg %p149
      $region46: #{_lambda_.7} parent=27 // pred_check_branch
        %520 = sbr.rel (%p518) target = $region48
      $region47: #{_lambda_.7} parent=27 // pred_region
        _
      $region48: #{_lambda_.7} parent=27 // pred_fallthru
        _
      // Predicated region
      $region49: #{_lambda_.7} parent=27 // pred_check
        %p521 = pneg %p149
      $region50: #{_lambda_.7} parent=27 // pred_check_branch
        %523 = sbr.rel (%p521) target = $region52
      $region51: #{_lambda_.7} parent=27 // pred_region
        %p524 = scmp.lt.s32.totalorder %s21, 0
        %s525 = scalar_select %p524, %s21, 0
        %s526 = smul.addr %s525, 2
        %s527 = scalar_lea.vmem %s3, %s526
      $region52: #{_lambda_.7} parent=27 // pred_fallthru
        _
    $region28: #{_lambda_.7} parent=5 // pred_fallthru
      _
    %p528 = scmp.le.s32.totalorder 2, %s10
    // Predicated region
    $region53: #{_lambda_.7} parent=5 // pred_check
      %p529 = pneg %p528
    $region54: #{_lambda_.7} parent=5 // pred_check_branch
      %531 = sbr.rel (%p529) target = $region56
    $region55: #{_lambda_.7} parent=5 // pred_region
      %s532 = ssub.s32 %s10, 2
      // Predicated region
      $region57: #{_lambda_.7} parent=55 // pred_check
        %p533 = pneg %p129
      $region58: #{_lambda_.7} parent=55 // pred_check_branch
        %535 = sbr.rel (%p533) target = $region60
      $region59: #{_lambda_.7} parent=55 // pred_region
        %s536 = smul.u32 4, %s27
        %p537 = scmp.lt.s32.totalorder %s26, 3
        %s538 = scalar_select %p537, %s26, 3
        %p539 = scmp.lt.s32.totalorder %s536, 3
        %s540 = scalar_select %p539, %s536, 3
        %p541 = scmp.lt.s32.totalorder %s25, 0
        %s542 = scalar_select %p541, %s25, 0
        %s543 = sadd.s32 %s542, %s540
        %s544 = smul.addr %s538, 4
        %s545 = sadd.s32 %s543, %s544
        %s546 = smul.addr %s545, 8
        %s547 = scalar_lea.vmem %s2, %s546
      $region60: #{_lambda_.7} parent=55 // pred_fallthru
        _
    $region56: #{_lambda_.7} parent=5 // pred_fallthru
      _
  $region6: #{_lambda_.7} parent=0 // loop_footer
    %s14 = sadd.s32 1, %s10
  $region7: #{_lambda_.7} parent=0 // loop_footer_branch
    %9 = sbr.rel target = $region3
  $region8: #{_lambda_.7} parent=0 // loop_exit
    _

// kernel: _lambda_.8
$region0: #{_lambda_.8}
  #allocation0 [shape = 'u32[]', space=smem, size = 0x4, offset = 0x4, fixed_abs, tag = 'smem constant byte address 0x4 - core index']
  #allocation1 [shape = 'u32[144,128]{1,0:T(1,128)}', space=vmem, size = 0x12000, scoped, tag = 'internal scratch']
  %s0 = inlined_call_operand.vmem [shape: f32[4,32,128], index: 0, kind: input, shape index: {}]
  %s1 = inlined_call_operand.vmem [shape: f32[1,128], index: 1, kind: input, shape index: {}]
  %s2 = inlined_call_operand.vmem [shape: f32[1,128], index: 2, kind: input, shape index: {}]
  %s3 = inlined_call_operand.vmem [shape: bf16[4,32,128], index: 3, kind: output, shape index: {}]
  %s4 = sld [smem:[#allocation0]]
  $region45: #{_lambda_.8} parent=0
    _
  %s6 = ssub.s32 1, %s4
  %s7 = scalar_select 0, %s6, %s4
  loop: start=0, step=1, limit=6
  $region2: #{_lambda_.8} parent=0 // loop_pre_header
    _
  $region3: #{_lambda_.8} parent=0 // loop_header
    %s9 = sphi 0, %s13
    %p10 = scmp.ge.s32.totalorder %s9, 6
    %s16 = sphi 0, %s35
    %s17 = sphi 0, %s31
    %s18 = sphi 0, %s27
    %s19 = sphi 0, %s16
    %s20 = sphi 0, %s17
    %s21 = sphi 0, %s18
    %s22 = sphi 0, %s19
    %s23 = sphi 0, %s20
    %s24 = sphi 0, %s21
    %s42 = sphi 0, %s44
    %s45 = sphi 0, %s42
    %s46 = sphi 0, %s45
    %s62 = sphi 0, %s46
    %s68 = sphi 0, %s70
    %s71 = sphi 0, %s68
    %s72 = sphi 0, %s71
    %s88 = sphi 0, %s72
    %s94 = sphi 0, %s96
    %s97 = sphi 0, %s94
    %s98 = sphi 0, %s97
    %s114 = sphi 0, %s98
    %s124 = sphi 0, %s126
    %s127 = sphi 0, %s124
    %s128 = sphi 0, %s127
    %s144 = sphi 0, %s128
  $region4: #{_lambda_.8} parent=0 // loop_header_branch
    %12 = sbr.rel (%p10) target = $region8
  $region5: #{_lambda_.8} parent=0 // loop_body
    %s14 = ssub.s32 %s9, 1
    %s15 = ssub.s32 %s9, 2
    %s25 = sadd.s32 1, %s18
    %p26 = scmp.ge.s32.totalorder %s25, 1
    %s27 = scalar_select %p26, 0, %s25
    %s28 = sadd.s32 1, %s17
    %s29 = scalar_select %p26, %s28, %s17
    %p30 = scmp.ge.s32.totalorder %s29, 1
    %s31 = scalar_select %p30, 0, %s29
    %s32 = sadd.s32 1, %s16
    %s33 = scalar_select %p30, %s32, %s16
    %p34 = scmp.ge.s32.totalorder %s33, 4
    %s35 = scalar_select %p34, 0, %s33
    %s36 = ssub.s32 %s16, %s35
    %s37 = ssub.s32 %s17, %s31
    %s38 = sor.u32 %s36, %s37
    %s39 = ssub.s32 %s18, %s27
    %s40 = sor.u32 %s38, %s39
    %p41 = scmp.eq.s32.totalorder %s40, 0
    %s43 = sadd.s32 %s42, 1
    %s44 = scalar_select %p41, %s42, %s43
    %p47 = pneg %p41
    %p48 = scmp.eq.s32.totalorder %s9, 3
    %p49 = por %p47, %p48
    %p50 = scmp.ne.s32.totalorder %s42, %s45
    %p51 = scmp.eq.s32.totalorder %s9, 0
    %p52 = por %p50, %p51
    %p53 = scmp.ne.s32.totalorder %s42, %s45
    %p54 = scmp.eq.s32.totalorder %s14, 3
    %p55 = por %p53, %p54
    %p56 = scmp.ne.s32.totalorder %s45, %s46
    %p57 = scmp.eq.s32.totalorder %s14, 0
    %p58 = por %p56, %p57
    %p59 = scmp.ne.s32.totalorder %s45, %s46
    %p60 = scmp.eq.s32.totalorder %s15, 3
    %p61 = por %p59, %p60
    %p63 = scmp.ne.s32.totalorder %s46, %s62
    %p64 = scmp.eq.s32.totalorder %s15, 0
    %p65 = por %p63, %p64
    %s66 = ssub.s32 %s18, %s27
    %p67 = scmp.eq.s32.totalorder %s66, 0
    %s69 = sadd.s32 %s68, 1
    %s70 = scalar_select %p67, %s68, %s69
    %p73 = pneg %p67
    %p74 = scmp.eq.s32.totalorder %s9, 3
    %p75 = por %p73, %p74
    %p76 = scmp.ne.s32.totalorder %s68, %s71
    %p77 = scmp.eq.s32.totalorder %s9, 0
    %p78 = por %p76, %p77
    %p79 = scmp.ne.s32.totalorder %s68, %s71
    %p80 = scmp.eq.s32.totalorder %s14, 3
    %p81 = por %p79, %p80
    %p82 = scmp.ne.s32.totalorder %s71, %s72
    %p83 = scmp.eq.s32.totalorder %s14, 0
    %p84 = por %p82, %p83
    %p85 = scmp.ne.s32.totalorder %s71, %s72
    %p86 = scmp.eq.s32.totalorder %s15, 3
    %p87 = por %p85, %p86
    %p89 = scmp.ne.s32.totalorder %s72, %s88
    %p90 = scmp.eq.s32.totalorder %s15, 0
    %p91 = por %p89, %p90
    %s92 = ssub.s32 %s18, %s27
    %p93 = scmp.eq.s32.totalorder %s92, 0
    %s95 = sadd.s32 %s94, 1
    %s96 = scalar_select %p93, %s94, %s95
    %p99 = pneg %p93
    %p100 = scmp.eq.s32.totalorder %s9, 3
    %p101 = por %p99, %p100
    %p102 = scmp.ne.s32.totalorder %s94, %s97
    %p103 = scmp.eq.s32.totalorder %s9, 0
    %p104 = por %p102, %p103
    %p105 = scmp.ne.s32.totalorder %s94, %s97
    %p106 = scmp.eq.s32.totalorder %s14, 3
    %p107 = por %p105, %p106
    %p108 = scmp.ne.s32.totalorder %s97, %s98
    %p109 = scmp.eq.s32.totalorder %s14, 0
    %p110 = por %p108, %p109
    %p111 = scmp.ne.s32.totalorder %s97, %s98
    %p112 = scmp.eq.s32.totalorder %s15, 3
    %p113 = por %p111, %p112
    %p115 = scmp.ne.s32.totalorder %s98, %s114
    %p116 = scmp.eq.s32.totalorder %s15, 0
    %p117 = por %p115, %p116
    %s118 = ssub.s32 %s16, %s35
    %s119 = ssub.s32 %s17, %s31
    %s120 = sor.u32 %s118, %s119
    %s121 = ssub.s32 %s18, %s27
    %s122 = sor.u32 %s120, %s121
    %p123 = scmp.eq.s32.totalorder %s122, 0
    %s125 = sadd.s32 %s124, 1
    %s126 = scalar_select %p123, %s124, %s125
    %p129 = pneg %p123
    %p130 = scmp.eq.s32.totalorder %s9, 3
    %p131 = por %p129, %p130
    %p132 = scmp.ne.s32.totalorder %s124, %s127
    %p133 = scmp.eq.s32.totalorder %s9, 0
    %p134 = por %p132, %p133
    %p135 = scmp.ne.s32.totalorder %s124, %s127
    %p136 = scmp.eq.s32.totalorder %s14, 3
    %p137 = por %p135, %p136
    %p138 = scmp.ne.s32.totalorder %s127, %s128
    %p139 = scmp.eq.s32.totalorder %s14, 0
    %p140 = por %p138, %p139
    %p141 = scmp.ne.s32.totalorder %s127, %s128
    %p142 = scmp.eq.s32.totalorder %s15, 3
    %p143 = por %p141, %p142
    %p145 = scmp.ne.s32.totalorder %s128, %s144
    %p146 = scmp.eq.s32.totalorder %s15, 0
    %p147 = por %p145, %p146
    %p148 = scmp.le.s32.totalorder 1, %s9
    %p149 = scmp.lt.s32.totalorder %s9, 5
    %p150 = pnand %p148, %p149
    %p151 = pneg %p150
    // Predicated region
    $region9: #{_lambda_.8} parent=5 // pred_check
      _
    $region10: #{_lambda_.8} parent=5 // pred_check_branch
      %153 = sbr.rel (%p150) target = $region12
    $region11: #{_lambda_.8} parent=5 // pred_region
      %s154 = ssub.s32 %s9, 1
      // Predicated region
      $region13: #{_lambda_.8} parent=11 // pred_check
        %p155 = pneg %p84
      $region14: #{_lambda_.8} parent=11 // pred_check_branch
        %157 = sbr.rel (%p155) target = $region16
      $region15: #{_lambda_.8} parent=11 // pred_region
        %p158 = scmp.lt.s32.totalorder %s21, 0
        %s159 = scalar_select %p158, %s21, 0
        %s160 = scalar_lea.vmem %s1, %s159
      $region16: #{_lambda_.8} parent=11 // pred_fallthru
        _
      // Predicated region
      $region17: #{_lambda_.8} parent=11 // pred_check
        %p161 = pneg %p110
      $region18: #{_lambda_.8} parent=11 // pred_check_branch
        %163 = sbr.rel (%p161) target = $region20
      $region19: #{_lambda_.8} parent=11 // pred_region
        %p164 = scmp.lt.s32.totalorder %s21, 0
        %s165 = scalar_select %p164, %s21, 0
        %s166 = scalar_lea.vmem %s2, %s165
      $region20: #{_lambda_.8} parent=11 // pred_fallthru
        _
    $region12: #{_lambda_.8} parent=5 // pred_fallthru
      _
    %p167 = scmp.lt.s32.totalorder %s9, 4
    // Predicated region
    $region21: #{_lambda_.8} parent=5 // pred_check
      %p168 = pneg %p167
    $region22: #{_lambda_.8} parent=5 // pred_check_branch
      %170 = sbr.rel (%p168) target = $region24
    $region23: #{_lambda_.8} parent=5 // pred_region
      // Predicated region
      $region25: #{_lambda_.8} parent=23 // pred_check
        %p171 = pneg %p52
      $region26: #{_lambda_.8} parent=23 // pred_check_branch
        %173 = sbr.rel (%p171) target = $region28
      $region27: #{_lambda_.8} parent=23 // pred_region
        %s174 = smul.u32 4, %s17
        %p175 = scmp.lt.s32.totalorder %s16, 3
        %s176 = scalar_select %p175, %s16, 3
        %p177 = scmp.lt.s32.totalorder %s174, 3
        %s178 = scalar_select %p177, %s174, 3
        %p179 = scmp.lt.s32.totalorder %s18, 0
        %s180 = scalar_select %p179, %s18, 0
        %s181 = sadd.s32 %s180, %s178
        %s182 = smul.addr %s176, 4
        %s183 = sadd.s32 %s181, %s182
        %s184 = smul.addr %s183, 8
        %s185 = scalar_lea.vmem %s0, %s184
        %s186 = smul.u32 4, %s17
      $region28: #{_lambda_.8} parent=23 // pred_fallthru
        _
    $region24: #{_lambda_.8} parent=5 // pred_fallthru
      _
    %p187 = scmp.le.s32.totalorder 1, %s9
    %p188 = scmp.lt.s32.totalorder %s9, 5
    %p189 = pnand %p187, %p188
    %p190 = pneg %p189
    // Predicated region
    $region29: #{_lambda_.8} parent=5 // pred_check
      _
    $region30: #{_lambda_.8} parent=5 // pred_check_branch
      %192 = sbr.rel (%p189) target = $region32
    $region31: #{_lambda_.8} parent=5 // pred_region
      %s193 = ssub.s32 %s9, 1
      %s194 = smul.u32 4, %s20
      %p195 = scmp.lt.s32.totalorder %s19, 3
      %s196 = scalar_select %p195, %s19, 3
      %p197 = scmp.lt.s32.totalorder %s194, 3
      %s198 = scalar_select %p197, %s194, 3
      %p199 = scmp.lt.s32.totalorder %s21, 0
      %s200 = scalar_select %p199, %s21, 0
      %s201 = sadd.s32 %s200, %s198
      %s202 = smul.addr %s196, 4
      %s203 = sadd.s32 %s201, %s202
      %s204 = smul.addr %s203, 8
      %s205 = scalar_lea.vmem %s0, %s204
      %p206 = pneg %p58
      %p207 = pneg %p55
      %p208 = scmp.lt.s32.totalorder %s21, 0
      %s209 = scalar_select %p208, %s21, 0
      %s210 = scalar_lea.vmem %s1, %s209
      %p211 = pneg %p84
      %p212 = pneg %p81
      %p213 = scmp.lt.s32.totalorder %s21, 0
      %s214 = scalar_select %p213, %s21, 0
      %s215 = scalar_lea.vmem %s2, %s214
      %p216 = pneg %p110
      %p217 = pneg %p107
      %p218 = pneg %p140
      %p219 = pneg %p137
      %s220 = smul.u32 4, %s20
      %p221 = scmp.lt.s32.totalorder %s19, 3
      %s222 = scalar_select %p221, %s19, 3
      %p223 = scmp.lt.s32.totalorder %s220, 3
      %s224 = scalar_select %p223, %s220, 3
      %p225 = scmp.lt.s32.totalorder %s21, 0
      %s226 = scalar_select %p225, %s21, 0
      %s227 = sadd.s32 %s226, %s224
      %s228 = smul.addr %s222, 4
      %s229 = sadd.s32 %s227, %s228
      %s230 = smul.addr %s229, 4
      %s231 = scalar_lea.vmem %s3, %s230
      %s232 = smul.u32 4, %s20
      %p233 = scmp.lt.s32.totalorder %s19, 3
      %s234 = scalar_select %p233, %s19, 3
      %p235 = scmp.lt.s32.totalorder %s232, 3
      %s236 = scalar_select %p235, %s232, 3
      %p237 = scmp.lt.s32.totalorder %s21, 0
      %s238 = scalar_select %p237, %s21, 0
      %s239 = sadd.s32 %s238, %s236
      %s240 = smul.addr %s234, 4
      %s241 = sadd.s32 %s239, %s240
      %s242 = smul.addr %s241, 8
      %s243 = scalar_lea.vmem %s0, %s242
      %s244 = smul.u32 4, %s20
      %p245 = scmp.lt.s32.totalorder %s21, 0
      %s246 = scalar_select %p245, %s21, 0
      %s247 = scalar_lea.vmem %s1, %s246
      %p248 = scmp.lt.s32.totalorder %s21, 0
      %s249 = scalar_select %p248, %s21, 0
      %s250 = scalar_lea.vmem %s2, %s249
      %s251 = smul.u32 4, %s20
      %p252 = scmp.lt.s32.totalorder %s19, 3
      %s253 = scalar_select %p252, %s19, 3
      %p254 = scmp.lt.s32.totalorder %s251, 3
      %s255 = scalar_select %p254, %s251, 3
      %p256 = scmp.lt.s32.totalorder %s21, 0
      %s257 = scalar_select %p256, %s21, 0
      %s258 = sadd.s32 %s257, %s255
      %s259 = smul.addr %s253, 4
      %s260 = sadd.s32 %s258, %s259
      %s261 = smul.addr %s260, 4
      %s262 = scalar_lea.vmem %s3, %s261
      %s263 = smul.u32 4, %s20
      %v264 = vld [vmem:[%s243] sm:$0xff]
      %v265 = vld [vmem:[%s243 + $0x8] sm:$0xff]
      %v266 = vld [vmem:[%s243 + $0x10] sm:$0xff]
      %v267 = vld [vmem:[%s243 + $0x18] sm:$0xff]
      %v268 = vld [vmem:[%s247] sm:$0x1]
      %v270 = vlaneseq
      %v271 = vshrl.u32 %v270, 7
      %v272 = vsub.s32 0, %v271
      %v273 = vrot.slane %v268, %v272
      %v275 = vmul.f32 %v264, %v273
      %v276 = vmul.f32 %v265, %v273
      %v277 = vmul.f32 %v266, %v273
      %v278 = vmul.f32 %v267, %v273
      %v279 = vld [vmem:[%s250] sm:$0x1]
      %v281 = vlaneseq
      %v282 = vshrl.u32 %v281, 7
      %v283 = vsub.s32 0, %v282
      %v284 = vrot.slane %v279, %v283
      %v286 = vadd.f32 %v275, %v284
      %v287 = vadd.f32 %v276, %v284
      %v288 = vadd.f32 %v277, %v284
      %v289 = vadd.f32 %v278, %v284
      %v290 = vmax.f32 %v286, 0.0
      %v291 = vmax.f32 %v287, 0.0
      %v292 = vmax.f32 %v288, 0.0
      %v293 = vmax.f32 %v289, 0.0
      %v294 = vpack.c.bf16 %v291, %v290
      %v295 = vpack.c.bf16 %v293, %v292
      %v298 = vunpack.c.l.b16 %v294
      %v299 = vunpack.c.h.b16 %v294
      %v300 = vunpack.c.l.b16 %v295
      %v301 = vunpack.c.h.b16 %v295
      %v302 = vpack.c.b16 %v298, %v298
      %v303 = vpack.c.b16 %v299, %v299
      %v304 = vpack.c.b16 %v300, %v300
      %v305 = vpack.c.b16 %v301, %v301
      %310 = vst [vmem:[%s262] sm:$0xf] %v302
      %311 = vst [vmem:[%s262 + $0x4] sm:$0xf] %v303
      %312 = vst [vmem:[%s262 + $0x8] sm:$0xf] %v304
      %313 = vst [vmem:[%s262 + $0xc] sm:$0xf] %v305
      %s314 = smul.u32 4, %s20
      %p315 = scmp.lt.s32.totalorder %s19, 3
      %s316 = scalar_select %p315, %s19, 3
      %p317 = scmp.lt.s32.totalorder %s314, 3
      %s318 = scalar_select %p317, %s314, 3
      %p319 = scmp.lt.s32.totalorder %s21, 0
      %s320 = scalar_select %p319, %s21, 0
      %s321 = sadd.s32 %s320, %s318
      %s322 = smul.addr %s316, 4
      %s323 = sadd.s32 %s321, %s322
      %s324 = smul.addr %s323, 4
      %s325 = scalar_lea.vmem %s3, %s324
      // Predicated region
      $region33: #{_lambda_.8} parent=31 // pred_check
        %p326 = pneg %p137
      $region34: #{_lambda_.8} parent=31 // pred_check_branch
        %328 = sbr.rel (%p326) target = $region36
      $region35: #{_lambda_.8} parent=31 // pred_region
        %s329 = smul.u32 4, %s20
      $region36: #{_lambda_.8} parent=31 // pred_fallthru
        _
    $region32: #{_lambda_.8} parent=5 // pred_fallthru
      _
    %p330 = scmp.le.s32.totalorder 2, %s9
    // Predicated region
    $region37: #{_lambda_.8} parent=5 // pred_check
      %p331 = pneg %p330
    $region38: #{_lambda_.8} parent=5 // pred_check_branch
      %333 = sbr.rel (%p331) target = $region40
    $region39: #{_lambda_.8} parent=5 // pred_region
      %s334 = ssub.s32 %s9, 2
      // Predicated region
      $region41: #{_lambda_.8} parent=39 // pred_check
        %p335 = pneg %p143
      $region42: #{_lambda_.8} parent=39 // pred_check_branch
        %337 = sbr.rel (%p335) target = $region44
      $region43: #{_lambda_.8} parent=39 // pred_region
        %s338 = smul.u32 4, %s23
        %p339 = scmp.lt.s32.totalorder %s22, 3
        %s340 = scalar_select %p339, %s22, 3
        %p341 = scmp.lt.s32.totalorder %s338, 3
        %s342 = scalar_select %p341, %s338, 3
        %p343 = scmp.lt.s32.totalorder %s24, 0
        %s344 = scalar_select %p343, %s24, 0
        %s345 = sadd.s32 %s344, %s342
        %s346 = smul.addr %s340, 4
        %s347 = sadd.s32 %s345, %s346
        %s348 = smul.addr %s347, 4
        %s349 = scalar_lea.vmem %s3, %s348
      $region44: #{_lambda_.8} parent=39 // pred_fallthru
        _
    $region40: #{_lambda_.8} parent=5 // pred_fallthru
      _
  $region6: #{_lambda_.8} parent=0 // loop_footer
    %s13 = sadd.s32 1, %s9
  $region7: #{_lambda_.8} parent=0 // loop_footer_branch
    %8 = sbr.rel target = $region3
  $region8: #{_lambda_.8} parent=0 // loop_exit
    _

// kernel: _lambda_.9
$region0: #{_lambda_.9}
  #allocation0 [shape = 'u32[]', space=smem, size = 0x4, offset = 0x4, fixed_abs, tag = 'smem constant byte address 0x4 - core index']
  #allocation1 [shape = 'u32[144,128]{1,0:T(1,128)}', space=vmem, size = 0x12000, scoped, tag = 'internal scratch']
  #allocation2 [shape = 'f32[128,128]{1,0:T(8,128)}', space=vmem, size = 0x10000, scoped, tag = 'scratch operand']
  %s0 = inlined_call_operand.vmem [shape: bf16[4,128,128], index: 0, kind: input, shape index: {}]
  %s1 = inlined_call_operand.vmem [shape: bf16[4,128,128], index: 1, kind: input, shape index: {}]
  %s2 = inlined_call_operand.vmem [shape: f32[4,128,128], index: 2, kind: output, shape index: {}]
  %s3 = sld [smem:[#allocation0]]
  $region49: #{_lambda_.9} parent=0
    _
  %s5 = ssub.s32 1, %s3
  %s6 = scalar_select 0, %s5, %s3
  loop: start=0, step=1, limit=6
  $region2: #{_lambda_.9} parent=0 // loop_pre_header
    _
  $region3: #{_lambda_.9} parent=0 // loop_header
    %s8 = sphi 0, %s12
    %p9 = scmp.ge.s32.totalorder %s8, 6
    %s15 = sphi 0, %s41
    %s16 = sphi 0, %s37
    %s17 = sphi 0, %s33
    %s18 = sphi 0, %s29
    %s19 = sphi 0, %s15
    %s20 = sphi 0, %s16
    %s21 = sphi 0, %s17
    %s22 = sphi 0, %s18
    %s23 = sphi 0, %s19
    %s24 = sphi 0, %s20
    %s25 = sphi 0, %s21
    %s26 = sphi 0, %s22
    %s48 = sphi 0, %s50
    %s51 = sphi 0, %s48
    %s52 = sphi 0, %s51
    %s68 = sphi 0, %s52
    %s78 = sphi 0, %s80
    %s81 = sphi 0, %s78
    %s82 = sphi 0, %s81
    %s98 = sphi 0, %s82
    %s108 = sphi 0, %s110
    %s111 = sphi 0, %s108
    %s112 = sphi 0, %s111
    %s128 = sphi 0, %s112
  $region4: #{_lambda_.9} parent=0 // loop_header_branch
    %11 = sbr.rel (%p9) target = $region8
  $region5: #{_lambda_.9} parent=0 // loop_body
    %s13 = ssub.s32 %s8, 1
    %s14 = ssub.s32 %s8, 2
    %s27 = sadd.s32 1, %s18
    %p28 = scmp.ge.s32.totalorder %s27, 1
    %s29 = scalar_select %p28, 0, %s27
    %s30 = sadd.s32 1, %s17
    %s31 = scalar_select %p28, %s30, %s17
    %p32 = scmp.ge.s32.totalorder %s31, 1
    %s33 = scalar_select %p32, 0, %s31
    %s34 = sadd.s32 1, %s16
    %s35 = scalar_select %p32, %s34, %s16
    %p36 = scmp.ge.s32.totalorder %s35, 4
    %s37 = scalar_select %p36, 0, %s35
    %s38 = sadd.s32 1, %s15
    %s39 = scalar_select %p36, %s38, %s15
    %p40 = scmp.ge.s32.totalorder %s39, 1
    %s41 = scalar_select %p40, 0, %s39
    %s42 = ssub.s32 %s16, %s37
    %s43 = ssub.s32 %s17, %s33
    %s44 = sor.u32 %s42, %s43
    %s45 = ssub.s32 %s18, %s29
    %s46 = sor.u32 %s44, %s45
    %p47 = scmp.eq.s32.totalorder %s46, 0
    %s49 = sadd.s32 %s48, 1
    %s50 = scalar_select %p47, %s48, %s49
    %p53 = pneg %p47
    %p54 = scmp.eq.s32.totalorder %s8, 3
    %p55 = por %p53, %p54
    %p56 = scmp.ne.s32.totalorder %s48, %s51
    %p57 = scmp.eq.s32.totalorder %s8, 0
    %p58 = por %p56, %p57
    %p59 = scmp.ne.s32.totalorder %s48, %s51
    %p60 = scmp.eq.s32.totalorder %s13, 3
    %p61 = por %p59, %p60
    %p62 = scmp.ne.s32.totalorder %s51, %s52
    %p63 = scmp.eq.s32.totalorder %s13, 0
    %p64 = por %p62, %p63
    %p65 = scmp.ne.s32.totalorder %s51, %s52
    %p66 = scmp.eq.s32.totalorder %s14, 3
    %p67 = por %p65, %p66
    %p69 = scmp.ne.s32.totalorder %s52, %s68
    %p70 = scmp.eq.s32.totalorder %s14, 0
    %p71 = por %p69, %p70
    %s72 = ssub.s32 %s16, %s37
    %s73 = ssub.s32 %s18, %s29
    %s74 = sor.u32 %s72, %s73
    %s75 = ssub.s32 %s15, %s41
    %s76 = sor.u32 %s74, %s75
    %p77 = scmp.eq.s32.totalorder %s76, 0
    %s79 = sadd.s32 %s78, 1
    %s80 = scalar_select %p77, %s78, %s79
    %p83 = pneg %p77
    %p84 = scmp.eq.s32.totalorder %s8, 3
    %p85 = por %p83, %p84
    %p86 = scmp.ne.s32.totalorder %s78, %s81
    %p87 = scmp.eq.s32.totalorder %s8, 0
    %p88 = por %p86, %p87
    %p89 = scmp.ne.s32.totalorder %s78, %s81
    %p90 = scmp.eq.s32.totalorder %s13, 3
    %p91 = por %p89, %p90
    %p92 = scmp.ne.s32.totalorder %s81, %s82
    %p93 = scmp.eq.s32.totalorder %s13, 0
    %p94 = por %p92, %p93
    %p95 = scmp.ne.s32.totalorder %s81, %s82
    %p96 = scmp.eq.s32.totalorder %s14, 3
    %p97 = por %p95, %p96
    %p99 = scmp.ne.s32.totalorder %s82, %s98
    %p100 = scmp.eq.s32.totalorder %s14, 0
    %p101 = por %p99, %p100
    %s102 = ssub.s32 %s16, %s37
    %s103 = ssub.s32 %s17, %s33
    %s104 = sor.u32 %s102, %s103
    %s105 = ssub.s32 %s15, %s41
    %s106 = sor.u32 %s104, %s105
    %p107 = scmp.eq.s32.totalorder %s106, 0
    %s109 = sadd.s32 %s108, 1
    %s110 = scalar_select %p107, %s108, %s109
    %p113 = pneg %p107
    %p114 = scmp.eq.s32.totalorder %s8, 3
    %p115 = por %p113, %p114
    %p116 = scmp.ne.s32.totalorder %s108, %s111
    %p117 = scmp.eq.s32.totalorder %s8, 0
    %p118 = por %p116, %p117
    %p119 = scmp.ne.s32.totalorder %s108, %s111
    %p120 = scmp.eq.s32.totalorder %s13, 3
    %p121 = por %p119, %p120
    %p122 = scmp.ne.s32.totalorder %s111, %s112
    %p123 = scmp.eq.s32.totalorder %s13, 0
    %p124 = por %p122, %p123
    %p125 = scmp.ne.s32.totalorder %s111, %s112
    %p126 = scmp.eq.s32.totalorder %s14, 3
    %p127 = por %p125, %p126
    %p129 = scmp.ne.s32.totalorder %s112, %s128
    %p130 = scmp.eq.s32.totalorder %s14, 0
    %p131 = por %p129, %p130
    %p132 = scmp.le.s32.totalorder 1, %s8
    %p133 = scmp.lt.s32.totalorder %s8, 5
    %p134 = pnand %p132, %p133
    %p135 = pneg %p134
    // Predicated region
    $region9: #{_lambda_.9} parent=5 // pred_check
      _
    $region10: #{_lambda_.9} parent=5 // pred_check_branch
      %137 = sbr.rel (%p134) target = $region12
    $region11: #{_lambda_.9} parent=5 // pred_region
      %s138 = ssub.s32 %s8, 1
    $region12: #{_lambda_.9} parent=5 // pred_fallthru
      _
    %p139 = scmp.lt.s32.totalorder %s8, 4
    // Predicated region
    $region13: #{_lambda_.9} parent=5 // pred_check
      %p140 = pneg %p139
    $region14: #{_lambda_.9} parent=5 // pred_check_branch
      %142 = sbr.rel (%p140) target = $region16
    $region15: #{_lambda_.9} parent=5 // pred_region
      // Predicated region
      $region17: #{_lambda_.9} parent=15 // pred_check
        %p143 = pneg %p58
      $region18: #{_lambda_.9} parent=15 // pred_check_branch
        %145 = sbr.rel (%p143) target = $region20
      $region19: #{_lambda_.9} parent=15 // pred_region
        %s146 = smul.u32 16, %s17
        %p147 = scmp.lt.s32.totalorder %s16, 3
        %s148 = scalar_select %p147, %s16, 3
        %p149 = scmp.lt.s32.totalorder %s146, 15
        %s150 = scalar_select %p149, %s146, 15
        %p151 = scmp.lt.s32.totalorder %s18, 0
        %s152 = scalar_select %p151, %s18, 0
        %s153 = sadd.s32 %s152, %s150
        %s154 = smul.addr %s148, 16
        %s155 = sadd.s32 %s153, %s154
        %s156 = smul.addr %s155, 4
        %s157 = scalar_lea.vmem %s0, %s156
        %s158 = smul.u32 16, %s17
      $region20: #{_lambda_.9} parent=15 // pred_fallthru
        _
      // Predicated region
      $region21: #{_lambda_.9} parent=15 // pred_check
        %p159 = pneg %p88
      $region22: #{_lambda_.9} parent=15 // pred_check_branch
        %161 = sbr.rel (%p159) target = $region24
      $region23: #{_lambda_.9} parent=15 // pred_region
        %s162 = smul.u32 16, %s18
        %p163 = scmp.lt.s32.totalorder %s16, 3
        %s164 = scalar_select %p163, %s16, 3
        %p165 = scmp.lt.s32.totalorder %s162, 15
        %s166 = scalar_select %p165, %s162, 15
        %p167 = scmp.lt.s32.totalorder %s15, 0
        %s168 = scalar_select %p167, %s15, 0
        %s169 = sadd.s32 %s168, %s166
        %s170 = smul.addr %s164, 16
        %s171 = sadd.s32 %s169, %s170
        %s172 = smul.addr %s171, 4
        %s173 = scalar_lea.vmem %s1, %s172
        %s174 = smul.u32 16, %s18
      $region24: #{_lambda_.9} parent=15 // pred_fallthru
        _
    $region16: #{_lambda_.9} parent=5 // pred_fallthru
      _
    %p175 = scmp.le.s32.totalorder 1, %s8
    %p176 = scmp.lt.s32.totalorder %s8, 5
    %p177 = pnand %p175, %p176
    %p178 = pneg %p177
    // Predicated region
    $region25: #{_lambda_.9} parent=5 // pred_check
      _
    $region26: #{_lambda_.9} parent=5 // pred_check_branch
      %180 = sbr.rel (%p177) target = $region28
    $region27: #{_lambda_.9} parent=5 // pred_region
      %s181 = ssub.s32 %s8, 1
      %s182 = smul.u32 16, %s21
      %p183 = scmp.lt.s32.totalorder %s20, 3
      %s184 = scalar_select %p183, %s20, 3
      %p185 = scmp.lt.s32.totalorder %s182, 15
      %s186 = scalar_select %p185, %s182, 15
      %p187 = scmp.lt.s32.totalorder %s22, 0
      %s188 = scalar_select %p187, %s22, 0
      %s189 = sadd.s32 %s188, %s186
      %s190 = smul.addr %s184, 16
      %s191 = sadd.s32 %s189, %s190
      %s192 = smul.addr %s191, 4
      %s193 = scalar_lea.vmem %s0, %s192
      %p194 = pneg %p64
      %p195 = pneg %p61
      %s196 = smul.u32 16, %s22
      %p197 = scmp.lt.s32.totalorder %s20, 3
      %s198 = scalar_select %p197, %s20, 3
      %p199 = scmp.lt.s32.totalorder %s196, 15
      %s200 = scalar_select %p199, %s196, 15
      %p201 = scmp.lt.s32.totalorder %s19, 0
      %s202 = scalar_select %p201, %s19, 0
      %s203 = sadd.s32 %s202, %s200
      %s204 = smul.addr %s198, 16
      %s205 = sadd.s32 %s203, %s204
      %s206 = smul.addr %s205, 4
      %s207 = scalar_lea.vmem %s1, %s206
      %p208 = pneg %p94
      %p209 = pneg %p91
      %p210 = pneg %p124
      %p211 = pneg %p121
      %s212 = smul.u32 16, %s21
      %p213 = scmp.lt.s32.totalorder %s20, 3
      %s214 = scalar_select %p213, %s20, 3
      %p215 = scmp.lt.s32.totalorder %s212, 15
      %s216 = scalar_select %p215, %s212, 15
      %p217 = scmp.lt.s32.totalorder %s19, 0
      %s218 = scalar_select %p217, %s19, 0
      %s219 = sadd.s32 %s218, %s216
      %s220 = smul.addr %s214, 16
      %s221 = sadd.s32 %s219, %s220
      %s222 = smul.addr %s221, 8
      %s223 = scalar_lea.vmem %s2, %s222
      %s224 = smul.u32 16, %s21
      %p225 = scmp.lt.s32.totalorder %s20, 3
      %s226 = scalar_select %p225, %s20, 3
      %p227 = scmp.lt.s32.totalorder %s224, 15
      %s228 = scalar_select %p227, %s224, 15
      %p229 = scmp.lt.s32.totalorder %s22, 0
      %s230 = scalar_select %p229, %s22, 0
      %s231 = sadd.s32 %s230, %s228
      %s232 = smul.addr %s226, 16
      %s233 = sadd.s32 %s231, %s232
      %s234 = smul.addr %s233, 4
      %s235 = scalar_lea.vmem %s0, %s234
      %s236 = smul.u32 16, %s21
      %s237 = smul.u32 16, %s22
      %p238 = scmp.lt.s32.totalorder %s20, 3
      %s239 = scalar_select %p238, %s20, 3
      %p240 = scmp.lt.s32.totalorder %s237, 15
      %s241 = scalar_select %p240, %s237, 15
      %p242 = scmp.lt.s32.totalorder %s19, 0
      %s243 = scalar_select %p242, %s19, 0
      %s244 = sadd.s32 %s243, %s241
      %s245 = smul.addr %s239, 16
      %s246 = sadd.s32 %s244, %s245
      %s247 = smul.addr %s246, 4
      %s248 = scalar_lea.vmem %s1, %s247
      %s249 = smul.u32 16, %s22
      %s250 = smul.u32 16, %s21
      %p251 = scmp.lt.s32.totalorder %s20, 3
      %s252 = scalar_select %p251, %s20, 3
      %p253 = scmp.lt.s32.totalorder %s250, 15
      %s254 = scalar_select %p253, %s250, 15
      %p255 = scmp.lt.s32.totalorder %s19, 0
      %s256 = scalar_select %p255, %s19, 0
      %s257 = sadd.s32 %s256, %s254
      %s258 = smul.addr %s252, 16
      %s259 = sadd.s32 %s257, %s258
      %s260 = smul.addr %s259, 8
      %s261 = scalar_lea.vmem %s2, %s260
      %s262 = smul.u32 16, %s21
      %p264 = scmp.eq.s32.totalorder %s22, 0
      // Predicated region
      $region29: #{_lambda_.9} parent=27 // pred_check
        %p265 = pneg %p264
      $region30: #{_lambda_.9} parent=27 // pred_check_branch
        %267 = sbr.rel (%p265) target = $region32
      $region31: #{_lambda_.9} parent=27 // pred_region
        %268 = vst [vmem:[#allocation2] sm:$0xff] 0.0
        %269 = vst [vmem:[#allocation2 + $0x8] sm:$0xff] 0.0
        %270 = vst [vmem:[#allocation2 + $0x10] sm:$0xff] 0.0
        %271 = vst [vmem:[#allocation2 + $0x18] sm:$0xff] 0.0
        %272 = vst [vmem:[#allocation2 + $0x20] sm:$0xff] 0.0
        %273 = vst [vmem:[#allocation2 + $0x28] sm:$0xff] 0.0
        %274 = vst [vmem:[#allocation2 + $0x30] sm:$0xff] 0.0
        %275 = vst [vmem:[#allocation2 + $0x38] sm:$0xff] 0.0
        %276 = vst [vmem:[#allocation2 + $0x40] sm:$0xff] 0.0
        %277 = vst [vmem:[#allocation2 + $0x48] sm:$0xff] 0.0
        %278 = vst [vmem:[#allocation2 + $0x50] sm:$0xff] 0.0
        %279 = vst [vmem:[#allocation2 + $0x58] sm:$0xff] 0.0
        %280 = vst [vmem:[#allocation2 + $0x60] sm:$0xff] 0.0
        %281 = vst [vmem:[#allocation2 + $0x68] sm:$0xff] 0.0
        %282 = vst [vmem:[#allocation2 + $0x70] sm:$0xff] 0.0
        %283 = vst [vmem:[#allocation2 + $0x78] sm:$0xff] 0.0
      $region32: #{_lambda_.9} parent=27 // pred_fallthru
        _
      %v284 = vld [vmem:[#allocation2] sm:$0xff]
      %v285 = vld [vmem:[#allocation2 + $0x8] sm:$0xff]
      %v286 = vld [vmem:[#allocation2 + $0x10] sm:$0xff]
      %v287 = vld [vmem:[#allocation2 + $0x18] sm:$0xff]
      %v288 = vld [vmem:[#allocation2 + $0x20] sm:$0xff]
      %v289 = vld [vmem:[#allocation2 + $0x28] sm:$0xff]
      %v290 = vld [vmem:[#allocation2 + $0x30] sm:$0xff]
      %v291 = vld [vmem:[#allocation2 + $0x38] sm:$0xff]
      %v292 = vld [vmem:[#allocation2 + $0x40] sm:$0xff]
      %v293 = vld [vmem:[#allocation2 + $0x48] sm:$0xff]
      %v294 = vld [vmem:[#allocation2 + $0x50] sm:$0xff]
      %v295 = vld [vmem:[#allocation2 + $0x58] sm:$0xff]
      %v296 = vld [vmem:[#allocation2 + $0x60] sm:$0xff]
      %v297 = vld [vmem:[#allocation2 + $0x68] sm:$0xff]
      %v298 = vld [vmem:[#allocation2 + $0x70] sm:$0xff]
      %v299 = vld [vmem:[#allocation2 + $0x78] sm:$0xff]
      %v300 = vld [vmem:[%s235] sm:$0xf]
      %v301 = vld [vmem:[%s235 + $0x4] sm:$0xf]
      %v302 = vld [vmem:[%s235 + $0x8] sm:$0xf]
      %v303 = vld [vmem:[%s235 + $0xc] sm:$0xf]
      %v304 = vld [vmem:[%s235 + $0x10] sm:$0xf]
      %v305 = vld [vmem:[%s235 + $0x14] sm:$0xf]
      %v306 = vld [vmem:[%s235 + $0x18] sm:$0xf]
      %v307 = vld [vmem:[%s235 + $0x1c] sm:$0xf]
      %v308 = vld [vmem:[%s235 + $0x20] sm:$0xf]
      %v309 = vld [vmem:[%s235 + $0x24] sm:$0xf]
      %v310 = vld [vmem:[%s235 + $0x28] sm:$0xf]
      %v311 = vld [vmem:[%s235 + $0x2c] sm:$0xf]
      %v312 = vld [vmem:[%s235 + $0x30] sm:$0xf]
      %v313 = vld [vmem:[%s235 + $0x34] sm:$0xf]
      %v314 = vld [vmem:[%s235 + $0x38] sm:$0xf]
      %v315 = vld [vmem:[%s235 + $0x3c] sm:$0xf]
      %v316 = vld [vmem:[%s248] sm:$0xf]
      %v317 = vld [vmem:[%s248 + $0x4] sm:$0xf]
      %v318 = vld [vmem:[%s248 + $0x8] sm:$0xf]
      %v319 = vld [vmem:[%s248 + $0xc] sm:$0xf]
      %v320 = vld [vmem:[%s248 + $0x10] sm:$0xf]
      %v321 = vld [vmem:[%s248 + $0x14] sm:$0xf]
      %v322 = vld [vmem:[%s248 + $0x18] sm:$0xf]
      %v323 = vld [vmem:[%s248 + $0x1c] sm:$0xf]
      %v324 = vld [vmem:[%s248 + $0x20] sm:$0xf]
      %v325 = vld [vmem:[%s248 + $0x24] sm:$0xf]
      %v326 = vld [vmem:[%s248 + $0x28] sm:$0xf]
      %v327 = vld [vmem:[%s248 + $0x2c] sm:$0xf]
      %v328 = vld [vmem:[%s248 + $0x30] sm:$0xf]
      %v329 = vld [vmem:[%s248 + $0x34] sm:$0xf]
      %v330 = vld [vmem:[%s248 + $0x38] sm:$0xf]
      %v331 = vld [vmem:[%s248 + $0x3c] sm:$0xf]
      %v348 = vunpack.c.l.b16 %v300
      %v349 = vunpack.c.l.b16 %v301
      %v350 = vunpack.c.l.b16 %v302
      %v351 = vunpack.c.l.b16 %v303
      %v352 = vunpack.c.l.b16 %v304
      %v353 = vunpack.c.l.b16 %v305
      %v354 = vunpack.c.l.b16 %v306
      %v355 = vunpack.c.l.b16 %v307
      %v356 = vunpack.c.l.b16 %v308
      %v357 = vunpack.c.l.b16 %v309
      %v358 = vunpack.c.l.b16 %v310
      %v359 = vunpack.c.l.b16 %v311
      %v360 = vunpack.c.l.b16 %v312
      %v361 = vunpack.c.l.b16 %v313
      %v362 = vunpack.c.l.b16 %v314
      %v363 = vunpack.c.l.b16 %v315
      %v364 = vpack.c.b16 %v349, %v348
      %v365 = vpack.c.b16 %v351, %v350
      %v366 = vpack.c.b16 %v353, %v352
      %v367 = vpack.c.b16 %v355, %v354
      %v368 = vpack.c.b16 %v357, %v356
      %v369 = vpack.c.b16 %v359, %v358
      %v370 = vpack.c.b16 %v361, %v360
      %v371 = vpack.c.b16 %v363, %v362
      %v396 = vunpack.c.l.b16 %v316
      %v397 = vunpack.c.l.b16 %v317
      %v398 = vunpack.c.l.b16 %v318
      %v399 = vunpack.c.l.b16 %v319
      %v400 = vunpack.c.l.b16 %v320
      %v401 = vunpack.c.l.b16 %v321
      %v402 = vunpack.c.l.b16 %v322
      %v403 = vunpack.c.l.b16 %v323
      %v404 = vunpack.c.l.b16 %v324
      %v405 = vunpack.c.l.b16 %v325
      %v406 = vunpack.c.l.b16 %v326
      %v407 = vunpack.c.l.b16 %v327
      %v408 = vunpack.c.l.b16 %v328
      %v409 = vunpack.c.l.b16 %v329
      %v410 = vunpack.c.l.b16 %v330
      %v411 = vunpack.c.l.b16 %v331
      %v412 = vpack.c.b16 %v397, %v396
      %v413 = vpack.c.b16 %v399, %v398
      %v414 = vpack.c.b16 %v401, %v400
      %v415 = vpack.c.b16 %v403, %v402
      %v416 = vpack.c.b16 %v405, %v404
      %v417 = vpack.c.b16 %v407, %v406
      %v418 = vpack.c.b16 %v409, %v408
      %v419 = vpack.c.b16 %v411, %v410
      %428 = vmatprep.subr.bf16.mxu0 0
      %429 = vmatpush1.bf16.msra.mxu0 %v412
      %430 = vmatprep.subr.bf16.mxu0 0
      %431 = vmatpush1.bf16.msra.mxu0 %v413
      %432 = vmatprep.subr.bf16.mxu0 0
      %433 = vmatpush1.bf16.msra.mxu0 %v414
      %434 = vmatprep.subr.bf16.mxu0 0
      %435 = vmatpush1.bf16.msra.mxu0 %v415
      %436 = vmatprep.subr.bf16.mxu0 0
      %437 = vmatpush1.bf16.msra.mxu0 %v416
      %438 = vmatprep.subr.bf16.mxu0 0
      %439 = vmatpush1.bf16.msra.mxu0 %v417
      %440 = vmatprep.subr.bf16.mxu0 0
      %441 = vmatpush1.bf16.msra.mxu0 %v418
      %442 = vmatprep.subr.bf16.mxu0 0
      %443 = vmatpush1.bf16.msra.mxu0 %v419
      %444 = vmatprep.subr.bf16.mxu0 0
      %445 = vmatpush1.bf16.msra.mxu0 0
      %446 = vmatprep.subr.bf16.mxu0 0
      %447 = vmatpush1.bf16.msra.mxu0 0
      %448 = vmatprep.subr.bf16.mxu0 0
      %449 = vmatpush1.bf16.msra.mxu0 0
      %450 = vmatprep.subr.bf16.mxu0 0
      %451 = vmatpush1.bf16.msra.mxu0 0
      %452 = vmatprep.subr.bf16.mxu0 0
      %453 = vmatpush1.bf16.msra.mxu0 0
      %454 = vmatprep.subr.bf16.mxu0 0
      %455 = vmatpush1.bf16.msra.mxu0 0
      %456 = vmatprep.subr.bf16.mxu0 0
      %457 = vmatpush1.bf16.msra.mxu0 0
      %458 = vmatprep.subr.bf16.mxu0 0
      %459 = vmatpush1.bf16.msra.mxu0 0
      %460 = vmatprep.mubr.bf16.mxu0 0
      %461 = vmatmul.mubr.bf16.gmra.mrb[0].mxu0 %v364
      %v462 = vpop.f32.mrb[0].mxu0
      %v463 = vadd.f32 0.0, %v462
      %v464 = vpop.f32.mrb[0].mxu0
      %v465 = vpop.f32.mrb[0].mxu0
      %v466 = vadd.f32 0.0, %v465
      %v467 = vpop.f32.mrb[0].mxu0
      %468 = vmatprep.mubr.bf16.mxu0 0
      %469 = vmatmul.mubr.bf16.gmra.mrb[0].mxu0 %v365
      %v470 = vpop.f32.mrb[0].mxu0
      %v471 = vadd.f32 0.0, %v470
      %v472 = vpop.f32.mrb[0].mxu0
      %v473 = vpop.f32.mrb[0].mxu0
      %v474 = vadd.f32 0.0, %v473
      %v475 = vpop.f32.mrb[0].mxu0
      %476 = vmatprep.mubr.bf16.mxu0 0
      %477 = vmatmul.mubr.bf16.gmra.mrb[0].mxu0 %v366
      %v478 = vpop.f32.mrb[0].mxu0
      %v479 = vadd.f32 0.0, %v478
      %v480 = vpop.f32.mrb[0].mxu0
      %v481 = vpop.f32.mrb[0].mxu0
      %v482 = vadd.f32 0.0, %v481
      %v483 = vpop.f32.mrb[0].mxu0
      %484 = vmatprep.mubr.bf16.mxu0 0
      %485 = vmatmul.mubr.bf16.gmra.mrb[0].mxu0 %v367
      %v486 = vpop.f32.mrb[0].mxu0
      %v487 = vadd.f32 0.0, %v486
      %v488 = vpop.f32.mrb[0].mxu0
      %v489 = vpop.f32.mrb[0].mxu0
      %v490 = vadd.f32 0.0, %v489
      %v491 = vpop.f32.mrb[0].mxu0
      %492 = vmatprep.mubr.bf16.mxu0 0
      %493 = vmatmul.mubr.bf16.gmra.mrb[0].mxu0 %v368
      %v494 = vpop.f32.mrb[0].mxu0
      %v495 = vadd.f32 0.0, %v494
      %v496 = vpop.f32.mrb[0].mxu0
      %v497 = vpop.f32.mrb[0].mxu0
      %v498 = vadd.f32 0.0, %v497
      %v499 = vpop.f32.mrb[0].mxu0
      %500 = vmatprep.mubr.bf16.mxu0 0
      %501 = vmatmul.mubr.bf16.gmra.mrb[0].mxu0 %v369
      %v502 = vpop.f32.mrb[0].mxu0
      %v503 = vadd.f32 0.0, %v502
      %v504 = vpop.f32.mrb[0].mxu0
      %v505 = vpop.f32.mrb[0].mxu0
      %v506 = vadd.f32 0.0, %v505
      %v507 = vpop.f32.mrb[0].mxu0
      %508 = vmatprep.mubr.bf16.mxu0 0
      %509 = vmatmul.mubr.bf16.gmra.mrb[0].mxu0 %v370
      %v510 = vpop.f32.mrb[0].mxu0
      %v511 = vadd.f32 0.0, %v510
      %v512 = vpop.f32.mrb[0].mxu0
      %v513 = vpop.f32.mrb[0].mxu0
      %v514 = vadd.f32 0.0, %v513
      %v515 = vpop.f32.mrb[0].mxu0
      %516 = vmatprep.mubr.bf16.mxu0 0
      %517 = vmatmul.mubr.bf16.gmra.mrb[0].mxu0 %v371
      %v518 = vpop.f32.mrb[0].mxu0
      %v519 = vadd.f32 0.0, %v518
      %v520 = vpop.f32.mrb[0].mxu0
      %v521 = vpop.f32.mrb[0].mxu0
      %v522 = vadd.f32 0.0, %v521
      %v523 = vpop.f32.mrb[0].mxu0
      %524 = vdwg.mxu0
      %v525 = vadd.f32 %v284, %v463
      %v526 = vadd.f32 %v285, %v466
      %v527 = vadd.f32 %v286, %v471
      %v528 = vadd.f32 %v287, %v474
      %v529 = vadd.f32 %v288, %v479
      %v530 = vadd.f32 %v289, %v482
      %v531 = vadd.f32 %v290, %v487
      %v532 = vadd.f32 %v291, %v490
      %v533 = vadd.f32 %v292, %v495
      %v534 = vadd.f32 %v293, %v498
      %v535 = vadd.f32 %v294, %v503
      %v536 = vadd.f32 %v295, %v506
      %v537 = vadd.f32 %v296, %v511
      %v538 = vadd.f32 %v297, %v514
      %v539 = vadd.f32 %v298, %v519
      %v540 = vadd.f32 %v299, %v522
      %541 = vst [vmem:[#allocation2] sm:$0xff] %v525
      %542 = vst [vmem:[#allocation2 + $0x8] sm:$0xff] %v526
      %543 = vst [vmem:[#allocation2 + $0x10] sm:$0xff] %v527
      %544 = vst [vmem:[#allocation2 + $0x18] sm:$0xff] %v528
      %545 = vst [vmem:[#allocation2 + $0x20] sm:$0xff] %v529
      %546 = vst [vmem:[#allocation2 + $0x28] sm:$0xff] %v530
      %547 = vst [vmem:[#allocation2 + $0x30] sm:$0xff] %v531
      %548 = vst [vmem:[#allocation2 + $0x38] sm:$0xff] %v532
      %549 = vst [vmem:[#allocation2 + $0x40] sm:$0xff] %v533
      %550 = vst [vmem:[#allocation2 + $0x48] sm:$0xff] %v534
      %551 = vst [vmem:[#allocation2 + $0x50] sm:$0xff] %v535
      %552 = vst [vmem:[#allocation2 + $0x58] sm:$0xff] %v536
      %553 = vst [vmem:[#allocation2 + $0x60] sm:$0xff] %v537
      %554 = vst [vmem:[#allocation2 + $0x68] sm:$0xff] %v538
      %555 = vst [vmem:[#allocation2 + $0x70] sm:$0xff] %v539
      %556 = vst [vmem:[#allocation2 + $0x78] sm:$0xff] %v540
      // Predicated region
      $region33: #{_lambda_.9} parent=27 // pred_check
        %p557 = pneg %p264
      $region34: #{_lambda_.9} parent=27 // pred_check_branch
        %559 = sbr.rel (%p557) target = $region36
      $region35: #{_lambda_.9} parent=27 // pred_region
        %v560 = vld [vmem:[#allocation2] sm:$0xff]
        %v561 = vld [vmem:[#allocation2 + $0x8] sm:$0xff]
        %v562 = vld [vmem:[#allocation2 + $0x10] sm:$0xff]
        %v563 = vld [vmem:[#allocation2 + $0x18] sm:$0xff]
        %v564 = vld [vmem:[#allocation2 + $0x20] sm:$0xff]
        %v565 = vld [vmem:[#allocation2 + $0x28] sm:$0xff]
        %v566 = vld [vmem:[#allocation2 + $0x30] sm:$0xff]
        %v567 = vld [vmem:[#allocation2 + $0x38] sm:$0xff]
        %v568 = vld [vmem:[#allocation2 + $0x40] sm:$0xff]
        %v569 = vld [vmem:[#allocation2 + $0x48] sm:$0xff]
        %v570 = vld [vmem:[#allocation2 + $0x50] sm:$0xff]
        %v571 = vld [vmem:[#allocation2 + $0x58] sm:$0xff]
        %v572 = vld [vmem:[#allocation2 + $0x60] sm:$0xff]
        %v573 = vld [vmem:[#allocation2 + $0x68] sm:$0xff]
        %v574 = vld [vmem:[#allocation2 + $0x70] sm:$0xff]
        %v575 = vld [vmem:[#allocation2 + $0x78] sm:$0xff]
        %v576 = vtanh.pop %v560
        %v577 = vtanh.pop %v561
        %v578 = vtanh.pop %v562
        %v579 = vtanh.pop %v563
        %v580 = vtanh.pop %v564
        %v581 = vtanh.pop %v565
        %v582 = vtanh.pop %v566
        %v583 = vtanh.pop %v567
        %v584 = vtanh.pop %v568
        %v585 = vtanh.pop %v569
        %v586 = vtanh.pop %v570
        %v587 = vtanh.pop %v571
        %v588 = vtanh.pop %v572
        %v589 = vtanh.pop %v573
        %v590 = vtanh.pop %v574
        %v591 = vtanh.pop %v575
        %592 = vst [vmem:[%s261] sm:$0xff] %v576
        %593 = vst [vmem:[%s261 + $0x8] sm:$0xff] %v577
        %594 = vst [vmem:[%s261 + $0x10] sm:$0xff] %v578
        %595 = vst [vmem:[%s261 + $0x18] sm:$0xff] %v579
        %596 = vst [vmem:[%s261 + $0x20] sm:$0xff] %v580
        %597 = vst [vmem:[%s261 + $0x28] sm:$0xff] %v581
        %598 = vst [vmem:[%s261 + $0x30] sm:$0xff] %v582
        %599 = vst [vmem:[%s261 + $0x38] sm:$0xff] %v583
        %600 = vst [vmem:[%s261 + $0x40] sm:$0xff] %v584
        %601 = vst [vmem:[%s261 + $0x48] sm:$0xff] %v585
        %602 = vst [vmem:[%s261 + $0x50] sm:$0xff] %v586
        %603 = vst [vmem:[%s261 + $0x58] sm:$0xff] %v587
        %604 = vst [vmem:[%s261 + $0x60] sm:$0xff] %v588
        %605 = vst [vmem:[%s261 + $0x68] sm:$0xff] %v589
        %606 = vst [vmem:[%s261 + $0x70] sm:$0xff] %v590
        %607 = vst [vmem:[%s261 + $0x78] sm:$0xff] %v591
      $region36: #{_lambda_.9} parent=27 // pred_fallthru
        _
      %s608 = smul.u32 16, %s21
      %p609 = scmp.lt.s32.totalorder %s20, 3
      %s610 = scalar_select %p609, %s20, 3
      %p611 = scmp.lt.s32.totalorder %s608, 15
      %s612 = scalar_select %p611, %s608, 15
      %p613 = scmp.lt.s32.totalorder %s19, 0
      %s614 = scalar_select %p613, %s19, 0
      %s615 = sadd.s32 %s614, %s612
      %s616 = smul.addr %s610, 16
      %s617 = sadd.s32 %s615, %s616
      %s618 = smul.addr %s617, 8
      %s619 = scalar_lea.vmem %s2, %s618
      // Predicated region
      $region37: #{_lambda_.9} parent=27 // pred_check
        %p620 = pneg %p121
      $region38: #{_lambda_.9} parent=27 // pred_check_branch
        %622 = sbr.rel (%p620) target = $region40
      $region39: #{_lambda_.9} parent=27 // pred_region
        %s623 = smul.u32 16, %s21
      $region40: #{_lambda_.9} parent=27 // pred_fallthru
        _
    $region28: #{_lambda_.9} parent=5 // pred_fallthru
      _
    %p624 = scmp.le.s32.totalorder 2, %s8
    // Predicated region
    $region41: #{_lambda_.9} parent=5 // pred_check
      %p625 = pneg %p624
    $region42: #{_lambda_.9} parent=5 // pred_check_branch
      %627 = sbr.rel (%p625) target = $region44
    $region43: #{_lambda_.9} parent=5 // pred_region
      %s628 = ssub.s32 %s8, 2
      // Predicated region
      $region45: #{_lambda_.9} parent=43 // pred_check
        %p629 = pneg %p127
      $region46: #{_lambda_.9} parent=43 // pred_check_branch
        %631 = sbr.rel (%p629) target = $region48
      $region47: #{_lambda_.9} parent=43 // pred_region
        %s632 = smul.u32 16, %s25
        %p633 = scmp.lt.s32.totalorder %s24, 3
        %s634 = scalar_select %p633, %s24, 3
        %p635 = scmp.lt.s32.totalorder %s632, 15
        %s636 = scalar_select %p635, %s632, 15
        %p637 = scmp.lt.s32.totalorder %s23, 0
        %s638 = scalar_select %p637, %s23, 0
        %s639 = sadd.s32 %s638, %s636
        %s640 = smul.addr %s634, 16
        %s641 = sadd.s32 %s639, %s640
        %s642 = smul.addr %s641, 8
        %s643 = scalar_lea.vmem %s2, %s642
      $region48: #{_lambda_.9} parent=43 // pred_fallthru
        _
    $region44: #{_lambda_.9} parent=5 // pred_fallthru
      _
  $region6: #{_lambda_.9} parent=0 // loop_footer
    %s12 = sadd.s32 1, %s8
  $region7: #{_lambda_.9} parent=0 // loop_footer_branch
    %7 = sbr.rel target = $region3
  $region8: #{_lambda_.9} parent=0 // loop_exit
    _

</llo_original>
